<compile_context>
chip_gen: v7x
topology: tpu7x:2x2x1
jax: 0.10.0
libtpu: 0.0.40
codegen_flags: <defaults>
</compile_context>

<pallas_src>
import functools

import jax
import jax.numpy as jnp
from jax import lax
from jax.experimental import pallas as pl
from jax.experimental.pallas import tpu as pltpu


def _round_up(x, m):
    return (x + m - 1) // m * m


# ---------------------------------------------------------------------------
# Kernel 1: embedding-bag (DMA gather + masked mean) -> h = (B_pad, D_pad)
# ---------------------------------------------------------------------------
def _embed_bag_kernel(ctx_ref, w_proj_hbm, h_ref, rowbuf, sem, *,
                      pad_idx, C, rows_per_step):
    """h[row] = (1/C) * sum_c Emb[ctx[row, c]]; pad tokens contribute 0.

    ctx_ref:    SMEM (B_pad*C,) int32 (scalar-prefetched), padded rows = pad_idx
    w_proj_hbm: HBM (V, D_pad) f32 (memory_space=ANY, manual DMA gather)
    rowbuf:     VMEM (2, C, D_pad) f32 double buffer (C concurrent DMAs/slot)
    sem:        DMA semaphores (2, C)
    """
    D = h_ref.shape[1]
    t = pl.program_id(0)
    base = t * (rows_per_step * C)
    inv_c = jnp.float32(1.0 / C)

    def issue_row(r, slot):
        # Launch C concurrent row DMAs (hides HBM latency; was 1-at-a-time).
        for c in range(C):
            tok = ctx_ref[base + r * C + c]
            pltpu.make_async_copy(
                w_proj_hbm.at[pl.ds(tok, 1), :],
                rowbuf.at[slot, pl.ds(c, 1), :],
                sem.at[slot, c],
            ).start()

    issue_row(0, 0)  # prime the double buffer

    def body_r(r, carry):
        slot = r & 1

        # Scalar reads BEFORE any DMA wait (.wait() breaks SMEM sst->sld fwd).
        toks = [ctx_ref[base + r * C + c] for c in range(C)]
        scales = [jnp.where(tk != pad_idx, inv_c, jnp.float32(0.0))
                  for tk in toks]

        # Prefetch the next batch row's C embedding rows into the other slot.
        @pl.when(r + 1 < rows_per_step)
        def _():
            issue_row(r + 1, 1 - slot)

        # Wait for the current row's DMAs (src/dst match the start descriptors).
        for c in range(C):
            pltpu.make_async_copy(
                w_proj_hbm.at[pl.ds(toks[c], 1), :],
                rowbuf.at[slot, pl.ds(c, 1), :],
                sem.at[slot, c],
            ).wait()

        tile = rowbuf[slot]                      # (C, D_pad)
        acc = tile[0:1, :] * scales[0]
        for c in range(1, C):
            acc = acc + tile[c:c + 1, :] * scales[c]
        h_ref[pl.ds(r, 1), :] = acc
        return carry

    lax.fori_loop(0, rows_per_step, body_r, 0)


# ---------------------------------------------------------------------------
# Kernel 2 (fused): classifier matmul + online log-sum-exp + normalization.
# The (b_tile, V_pad) output strip stays resident in VMEM across the V axis.
# ---------------------------------------------------------------------------
def _fused_classifier_kernel(h_ref, w_cls_ref, b_ref, out_ref, m_sc, l_sc, *,
                             v_true, v_tile):
    k = pl.program_id(1)
    n_v = pl.num_programs(1)

    @pl.when(k == 0)
    def _():
        m_sc[...] = jnp.full_like(m_sc, -jnp.inf)
        l_sc[...] = jnp.zeros_like(l_sc)

    # MXU matmul: bf16 (or f32) operands, f32 accumulate.
    logits = jnp.dot(h_ref[...].astype(w_cls_ref.dtype), w_cls_ref[...],
                     preferred_element_type=jnp.float32) + b_ref[...]

    # Write this v_tile slice of the resident row strip (lane-aligned offset).
    col0 = pl.multiple_of(k * v_tile, v_tile)
    out_ref[:, pl.ds(col0, v_tile)] = logits

    # Online log-sum-exp; vocab-padding lanes masked to -inf so they cannot
    # perturb the normalizer (every tile has >= 1 real column by construction).
    col = k * v_tile + lax.broadcasted_iota(jnp.int32, logits.shape, 1)
    masked = jnp.where(col < v_true, logits, -jnp.inf)
    m_new = jnp.maximum(m_sc[...], masked.max(axis=1, keepdims=True))
    alpha = jnp.exp(m_sc[...] - m_new)
    l_sc[...] = alpha * l_sc[...] + jnp.exp(masked - m_new).sum(axis=1,
                                                                keepdims=True)
    m_sc[...] = m_new

    # Last V step: normalize the whole strip in place (chunked to stay in vregs).
    @pl.when(k == n_v - 1)
    def _():
        lse = m_sc[...] + jnp.log(l_sc[...])

        def sub_chunk(j, carry):
            c0 = pl.multiple_of(j * v_tile, v_tile)
            out_ref[:, pl.ds(c0, v_tile)] = out_ref[:, pl.ds(c0, v_tile)] - lse
            return carry

        lax.fori_loop(0, n_v, sub_chunk, 0)


# ---------------------------------------------------------------------------
# Wrapper: prepare (pad/cast once) + forward
# ---------------------------------------------------------------------------
def prepare_cbow_params(w_projT, w_clsT, b_cls, *, v_tile=512,
                        w_stream_dtype=jnp.bfloat16):
    """Pad/cast the weights once (hoisted out of the per-call hot path).

    w_projT: (V, D) == projection.weight.T    (kept f32; gathered row by row)
    w_clsT:  (D, V) == classifier.weight.T    (streamed as w_stream_dtype)
    b_cls:   (V,)   classifier bias (f32)
    """
    V, D = w_projT.shape
    assert w_clsT.shape == (D, V) and b_cls.shape == (V,)
    assert v_tile % 128 == 0
    v_tile = min(v_tile, _round_up(V, 128))
    D_pad = _round_up(D, 128)
    V_pad = _round_up(V, v_tile)
    # Guarantees every V tile has >=1 real column (no all--inf tile -> no NaN).
    assert V_pad - V < v_tile

    w_projT_p = jnp.pad(w_projT.astype(jnp.float32), ((0, 0), (0, D_pad - D)))
    w_clsT_p = jnp.pad(w_clsT.astype(jnp.float32),
                       ((0, D_pad - D), (0, V_pad - V))).astype(w_stream_dtype)
    b_p = jnp.pad(b_cls.astype(jnp.float32), (0, V_pad - V)).reshape(1, V_pad)
    return dict(w_projT=w_projT_p, w_clsT=w_clsT_p, bias=b_p,
                V=V, D=D, V_pad=V_pad, D_pad=D_pad, v_tile=v_tile)


def word2vec_cbow_forward(context, params, *, pad_idx, b_tile=64):
    """log_softmax(mean_c(Emb[context]) @ W_clsT + b) -> (B, V) f32."""
    B, C = context.shape
    V, D = params["V"], params["D"]
    V_pad, D_pad, v_tile = params["V_pad"], params["D_pad"], params["v_tile"]
    assert 0 <= pad_idx < V
    assert b_tile % 8 == 0
    b_tile = min(b_tile, _round_up(B, 8))
    B_pad = _round_up(B, b_tile)
    n_b, n_v = B_pad // b_tile, V_pad // v_tile

    # Pad batch rows with pad_idx tokens: they reduce to h == 0 for free.
    ctx = context.astype(jnp.int32)
    if B_pad != B:
        ctx = jnp.pad(ctx, ((0, B_pad - B), (0, 0)), constant_values=pad_idx)
    ctx_flat = ctx.reshape(B_pad * C)

    # --- 1) embedding-bag: batched DMA gather + masked mean ----------------
    h = pl.pallas_call(
        functools.partial(_embed_bag_kernel, pad_idx=pad_idx, C=C,
                          rows_per_step=b_tile),
        out_shape=jax.ShapeDtypeStruct((B_pad, D_pad), jnp.float32),
        grid_spec=pltpu.PrefetchScalarGridSpec(
            num_scalar_prefetch=1,                       # context ids -> SMEM
            grid=(n_b,),
            in_specs=[pl.BlockSpec(memory_space=pl.ANY)],  # W_projT stays in HBM
            out_specs=pl.BlockSpec((b_tile, D_pad), lambda t, ctx_ref: (t, 0)),
            scratch_shapes=[
                pltpu.VMEM((2, C, D_pad), jnp.float32),    # C-row double buffer
                pltpu.SemaphoreType.DMA((2, C)),
            ],
        ),
        compiler_params=pltpu.CompilerParams(
            dimension_semantics=("parallel",)),            # megacore on v7x
    )(ctx_flat, params["w_projT"])

    # --- 2) fused classifier + online LSE + normalization ------------------
    w_itemsize = params["w_clsT"].dtype.itemsize
    vmem_need = (2 * b_tile * D_pad * 4            # h block (double-buffered)
                 + 2 * D_pad * v_tile * w_itemsize  # W_clsT stream
                 + 2 * v_tile * 4                   # bias
                 + 2 * b_tile * V_pad * 4           # resident logits strip
                 + 4 * b_tile * 4)                  # m/l scratch
    # Headroom, capped at 48 MiB so the same tiling also fits v7x (64 MiB VMEM).
    vmem_limit = min(max(int(1.5 * vmem_need) + (2 << 20), 16 << 20), 48 << 20)

    out = pl.pallas_call(
        functools.partial(_fused_classifier_kernel, v_true=V, v_tile=v_tile),
        out_shape=jax.ShapeDtypeStruct((B_pad, V_pad), jnp.float32),
        grid=(n_b, n_v),
        in_specs=[
            pl.BlockSpec((b_tile, D_pad), lambda i, k: (i, 0)),
            pl.BlockSpec((D_pad, v_tile), lambda i, k: (0, k)),
            pl.BlockSpec((1, v_tile), lambda i, k: (0, k)),
        ],
        out_specs=pl.BlockSpec((b_tile, V_pad), lambda i, k: (i, 0)),
        scratch_shapes=[
            pltpu.VMEM((b_tile, 1), jnp.float32),   # running max
            pltpu.VMEM((b_tile, 1), jnp.float32),   # running sum-exp
        ],
        compiler_params=pltpu.CompilerParams(
            dimension_semantics=("parallel", "arbitrary"),
            vmem_limit_bytes=vmem_limit,
        ),
    )(h, params["w_clsT"], params["bias"])

    if B_pad == B and V_pad == V:
        return out
    return out[:B, :V]


# ---------------------------------------------------------------------------
# Pure-JAX reference (mirrors the PyTorch module)
# ---------------------------------------------------------------------------
def cbow_reference(context, w_projT, w_clsT, b_cls, *, pad_idx):
    V = w_projT.shape[0]
    onehot = jax.nn.one_hot(context, V, dtype=jnp.float32)
    onehot = onehot.at[:, :, pad_idx].set(0.0)
    h = (onehot @ w_projT).mean(axis=1)
    logits = h @ w_clsT + b_cls
    return jax.nn.log_softmax(logits, axis=1)


if __name__ == "__main__":
    # Small, deterministic shapes; V=640 exercises the multi-tile V path and
    # the vocab-padding mask (V_pad=1024, v_tile=512).
    B, C = 4, 8          # batch, context-window size
    V, D = 640, 128      # vocab_size, vector_dim
    pad_idx = 0

    key = jax.random.PRNGKey(0)
    k_ctx, k_proj, k_cls, k_bias = jax.random.split(key, 4)

    context = jax.random.randint(k_ctx, (B, C), 0, V, dtype=jnp.int32)
    # Force a few pad tokens so the masking path is exercised.
    context = context.at[0, 0].set(pad_idx).at[1, 3].set(pad_idx)

    # torch projection.weight: (D, V) -> stored transposed (V, D)
    w_projT = jax.random.normal(k_proj, (V, D), dtype=jnp.float32) * 0.1
    # torch classifier.weight: (V, D) -> stored transposed (D, V)
    w_clsT = jax.random.normal(k_cls, (D, V), dtype=jnp.float32) * 0.1
    b_cls = jax.random.normal(k_bias, (V,), dtype=jnp.float32) * 0.1

    ref = cbow_reference(context, w_projT, w_clsT, b_cls, pad_idx=pad_idx)

    # f32 weight stream: tight check of the kernel math vs the f32 reference.
    params_f32 = prepare_cbow_params(w_projT, w_clsT, b_cls,
                                     w_stream_dtype=jnp.float32)
    out_f32 = word2vec_cbow_forward(context, params_f32, pad_idx=pad_idx)
    out_f32 = jax.block_until_ready(out_f32)
    assert out_f32.shape == (B, V)
    assert jnp.allclose(out_f32, ref, atol=5e-5, rtol=5e-5), \
        float(jnp.max(jnp.abs(out_f32 - ref)))

    # bf16 weight stream (default; halves the dominant HBM traffic) — looser
    # tolerance is expected from the reduced-precision weight stream.
    params_bf16 = prepare_cbow_params(w_projT, w_clsT, b_cls)
    out_bf16 = word2vec_cbow_forward(context, params_bf16, pad_idx=pad_idx)
    out_bf16 = jax.block_until_ready(out_bf16)
    assert out_bf16.shape == (B, V)
    assert jnp.allclose(out_bf16, ref, atol=2e-2, rtol=2e-2), \
        float(jnp.max(jnp.abs(out_bf16 - ref)))

    print("KERNEL_OK")
</pallas_src>

<mosaic_0001>
module attributes {stable_mosaic.version = 11 : i64} {
  func.func @_embed_bag_kernel(%arg0: i32, %arg1: memref<64xi32, #tpu.memory_space<smem>>, %arg2: memref<640x128xf32, #tpu.memory_space<any>>, %arg3: memref<8x128xf32, #tpu.memory_space<vmem>>, %arg4: memref<2x8x128xf32, #tpu.memory_space<vmem>>, %arg5: memref<2x8x!tpu.dma_semaphore, #tpu.memory_space<semaphore_mem>>) attributes {dimension_semantics = [#tpu.dimension_semantics<parallel>], iteration_bounds = array<i64: 1>, scalar_prefetch = 1 : i64, scratch_operands = 2 : i64, tpu.core_type = #tpu.core_type<tc>, window_params = [{}, {transform_indices = @transform_1, window_bounds = array<i64: 8, 128>}]} {
    %c64_i32 = arith.constant 64 : i32
    %0 = arith.muli %arg0, %c64_i32 : i32
    %c0_i32 = arith.constant 0 : i32
    %1 = arith.addi %0, %c0_i32 : i32
    %c0_i32_0 = arith.constant 0 : i32
    %2 = arith.addi %1, %c0_i32_0 : i32
    %3 = arith.index_cast %2 : i32 to index
    %4 = memref.load %arg1[%3] : memref<64xi32, #tpu.memory_space<smem>>
    %c0_i32_1 = arith.constant 0 : i32
    %c0_i32_2 = arith.constant 0 : i32
    %c0_i32_3 = arith.constant 0 : i32
    %c0_i32_4 = arith.constant 0 : i32
    %5 = tpu.memref_slice %arg2[%4, %c0_i32_4] : memref<640x128xf32, #tpu.memory_space<any>> -> memref<1x128xf32, #tpu.memory_space<any>>
    %c0_i32_5 = arith.constant 0 : i32
    %c0_i32_6 = arith.constant 0 : i32
    %6 = tpu.memref_slice %arg4[%c0_i32_1, %c0_i32_5, %c0_i32_6] : memref<2x8x128xf32, #tpu.memory_space<vmem>> -> memref<1x1x128xf32, #tpu.memory_space<vmem>>
    %7 = tpu.memref_squeeze %6 : memref<1x1x128xf32, #tpu.memory_space<vmem>> -> memref<1x128xf32, #tpu.memory_space<vmem>>
    %8 = tpu.memref_slice %arg5[%c0_i32_2, %c0_i32_3] : memref<2x8x!tpu.dma_semaphore, #tpu.memory_space<semaphore_mem>> -> memref<1x1x!tpu.dma_semaphore, #tpu.memory_space<semaphore_mem>>
    %9 = tpu.memref_squeeze %8 : memref<1x1x!tpu.dma_semaphore, #tpu.memory_space<semaphore_mem>> -> memref<!tpu.dma_semaphore, #tpu.memory_space<semaphore_mem>>
    tpu.enqueue_dma source(%5 : memref<1x128xf32, #tpu.memory_space<any>>) target(%7 : memref<1x128xf32, #tpu.memory_space<vmem>>) target_semaphore(%9 : memref<!tpu.dma_semaphore, #tpu.memory_space<semaphore_mem>>)
    %c0_i32_7 = arith.constant 0 : i32
    %10 = arith.addi %0, %c0_i32_7 : i32
    %c1_i32 = arith.constant 1 : i32
    %11 = arith.addi %10, %c1_i32 : i32
    %12 = arith.index_cast %11 : i32 to index
    %13 = memref.load %arg1[%12] : memref<64xi32, #tpu.memory_space<smem>>
    %c0_i32_8 = arith.constant 0 : i32
    %c0_i32_9 = arith.constant 0 : i32
    %c1_i32_10 = arith.constant 1 : i32
    %c0_i32_11 = arith.constant 0 : i32
    %14 = tpu.memref_slice %arg2[%13, %c0_i32_11] : memref<640x128xf32, #tpu.memory_space<any>> -> memref<1x128xf32, #tpu.memory_space<any>>
    %c1_i32_12 = arith.constant 1 : i32
    %c0_i32_13 = arith.constant 0 : i32
    %15 = tpu.memref_slice %arg4[%c0_i32_8, %c1_i32_12, %c0_i32_13] : memref<2x8x128xf32, #tpu.memory_space<vmem>> -> memref<1x1x128xf32, #tpu.memory_space<vmem>>
    %16 = tpu.memref_squeeze %15 : memref<1x1x128xf32, #tpu.memory_space<vmem>> -> memref<1x128xf32, #tpu.memory_space<vmem>>
    %17 = tpu.memref_slice %arg5[%c0_i32_9, %c1_i32_10] : memref<2x8x!tpu.dma_semaphore, #tpu.memory_space<semaphore_mem>> -> memref<1x1x!tpu.dma_semaphore, #tpu.memory_space<semaphore_mem>>
    %18 = tpu.memref_squeeze %17 : memref<1x1x!tpu.dma_semaphore, #tpu.memory_space<semaphore_mem>> -> memref<!tpu.dma_semaphore, #tpu.memory_space<semaphore_mem>>
    tpu.enqueue_dma source(%14 : memref<1x128xf32, #tpu.memory_space<any>>) target(%16 : memref<1x128xf32, #tpu.memory_space<vmem>>) target_semaphore(%18 : memref<!tpu.dma_semaphore, #tpu.memory_space<semaphore_mem>>)
    %c0_i32_14 = arith.constant 0 : i32
    %19 = arith.addi %0, %c0_i32_14 : i32
    %c2_i32 = arith.constant 2 : i32
    %20 = arith.addi %19, %c2_i32 : i32
    %21 = arith.index_cast %20 : i32 to index
    %22 = memref.load %arg1[%21] : memref<64xi32, #tpu.memory_space<smem>>
    %c0_i32_15 = arith.constant 0 : i32
    %c0_i32_16 = arith.constant 0 : i32
    %c2_i32_17 = arith.constant 2 : i32
    %c0_i32_18 = arith.constant 0 : i32
    %23 = tpu.memref_slice %arg2[%22, %c0_i32_18] : memref<640x128xf32, #tpu.memory_space<any>> -> memref<1x128xf32, #tpu.memory_space<any>>
    %c2_i32_19 = arith.constant 2 : i32
    %c0_i32_20 = arith.constant 0 : i32
    %24 = tpu.memref_slice %arg4[%c0_i32_15, %c2_i32_19, %c0_i32_20] : memref<2x8x128xf32, #tpu.memory_space<vmem>> -> memref<1x1x128xf32, #tpu.memory_space<vmem>>
    %25 = tpu.memref_squeeze %24 : memref<1x1x128xf32, #tpu.memory_space<vmem>> -> memref<1x128xf32, #tpu.memory_space<vmem>>
    %26 = tpu.memref_slice %arg5[%c0_i32_16, %c2_i32_17] : memref<2x8x!tpu.dma_semaphore, #tpu.memory_space<semaphore_mem>> -> memref<1x1x!tpu.dma_semaphore, #tpu.memory_space<semaphore_mem>>
    %27 = tpu.memref_squeeze %26 : memref<1x1x!tpu.dma_semaphore, #tpu.memory_space<semaphore_mem>> -> memref<!tpu.dma_semaphore, #tpu.memory_space<semaphore_mem>>
    tpu.enqueue_dma source(%23 : memref<1x128xf32, #tpu.memory_space<any>>) target(%25 : memref<1x128xf32, #tpu.memory_space<vmem>>) target_semaphore(%27 : memref<!tpu.dma_semaphore, #tpu.memory_space<semaphore_mem>>)
    %c0_i32_21 = arith.constant 0 : i32
    %28 = arith.addi %0, %c0_i32_21 : i32
    %c3_i32 = arith.constant 3 : i32
    %29 = arith.addi %28, %c3_i32 : i32
    %30 = arith.index_cast %29 : i32 to index
    %31 = memref.load %arg1[%30] : memref<64xi32, #tpu.memory_space<smem>>
    %c0_i32_22 = arith.constant 0 : i32
    %c0_i32_23 = arith.constant 0 : i32
    %c3_i32_24 = arith.constant 3 : i32
    %c0_i32_25 = arith.constant 0 : i32
    %32 = tpu.memref_slice %arg2[%31, %c0_i32_25] : memref<640x128xf32, #tpu.memory_space<any>> -> memref<1x128xf32, #tpu.memory_space<any>>
    %c3_i32_26 = arith.constant 3 : i32
    %c0_i32_27 = arith.constant 0 : i32
    %33 = tpu.memref_slice %arg4[%c0_i32_22, %c3_i32_26, %c0_i32_27] : memref<2x8x128xf32, #tpu.memory_space<vmem>> -> memref<1x1x128xf32, #tpu.memory_space<vmem>>
    %34 = tpu.memref_squeeze %33 : memref<1x1x128xf32, #tpu.memory_space<vmem>> -> memref<1x128xf32, #tpu.memory_space<vmem>>
    %35 = tpu.memref_slice %arg5[%c0_i32_23, %c3_i32_24] : memref<2x8x!tpu.dma_semaphore, #tpu.memory_space<semaphore_mem>> -> memref<1x1x!tpu.dma_semaphore, #tpu.memory_space<semaphore_mem>>
    %36 = tpu.memref_squeeze %35 : memref<1x1x!tpu.dma_semaphore, #tpu.memory_space<semaphore_mem>> -> memref<!tpu.dma_semaphore, #tpu.memory_space<semaphore_mem>>
    tpu.enqueue_dma source(%32 : memref<1x128xf32, #tpu.memory_space<any>>) target(%34 : memref<1x128xf32, #tpu.memory_space<vmem>>) target_semaphore(%36 : memref<!tpu.dma_semaphore, #tpu.memory_space<semaphore_mem>>)
    %c0_i32_28 = arith.constant 0 : i32
    %37 = arith.addi %0, %c0_i32_28 : i32
    %c4_i32 = arith.constant 4 : i32
    %38 = arith.addi %37, %c4_i32 : i32
    %39 = arith.index_cast %38 : i32 to index
    %40 = memref.load %arg1[%39] : memref<64xi32, #tpu.memory_space<smem>>
    %c0_i32_29 = arith.constant 0 : i32
    %c0_i32_30 = arith.constant 0 : i32
    %c4_i32_31 = arith.constant 4 : i32
    %c0_i32_32 = arith.constant 0 : i32
    %41 = tpu.memref_slice %arg2[%40, %c0_i32_32] : memref<640x128xf32, #tpu.memory_space<any>> -> memref<1x128xf32, #tpu.memory_space<any>>
    %c4_i32_33 = arith.constant 4 : i32
    %c0_i32_34 = arith.constant 0 : i32
    %42 = tpu.memref_slice %arg4[%c0_i32_29, %c4_i32_33, %c0_i32_34] : memref<2x8x128xf32, #tpu.memory_space<vmem>> -> memref<1x1x128xf32, #tpu.memory_space<vmem>>
    %43 = tpu.memref_squeeze %42 : memref<1x1x128xf32, #tpu.memory_space<vmem>> -> memref<1x128xf32, #tpu.memory_space<vmem>>
    %44 = tpu.memref_slice %arg5[%c0_i32_30, %c4_i32_31] : memref<2x8x!tpu.dma_semaphore, #tpu.memory_space<semaphore_mem>> -> memref<1x1x!tpu.dma_semaphore, #tpu.memory_space<semaphore_mem>>
    %45 = tpu.memref_squeeze %44 : memref<1x1x!tpu.dma_semaphore, #tpu.memory_space<semaphore_mem>> -> memref<!tpu.dma_semaphore, #tpu.memory_space<semaphore_mem>>
    tpu.enqueue_dma source(%41 : memref<1x128xf32, #tpu.memory_space<any>>) target(%43 : memref<1x128xf32, #tpu.memory_space<vmem>>) target_semaphore(%45 : memref<!tpu.dma_semaphore, #tpu.memory_space<semaphore_mem>>)
    %c0_i32_35 = arith.constant 0 : i32
    %46 = arith.addi %0, %c0_i32_35 : i32
    %c5_i32 = arith.constant 5 : i32
    %47 = arith.addi %46, %c5_i32 : i32
    %48 = arith.index_cast %47 : i32 to index
    %49 = memref.load %arg1[%48] : memref<64xi32, #tpu.memory_space<smem>>
    %c0_i32_36 = arith.constant 0 : i32
    %c0_i32_37 = arith.constant 0 : i32
    %c5_i32_38 = arith.constant 5 : i32
    %c0_i32_39 = arith.constant 0 : i32
    %50 = tpu.memref_slice %arg2[%49, %c0_i32_39] : memref<640x128xf32, #tpu.memory_space<any>> -> memref<1x128xf32, #tpu.memory_space<any>>
    %c5_i32_40 = arith.constant 5 : i32
    %c0_i32_41 = arith.constant 0 : i32
    %51 = tpu.memref_slice %arg4[%c0_i32_36, %c5_i32_40, %c0_i32_41] : memref<2x8x128xf32, #tpu.memory_space<vmem>> -> memref<1x1x128xf32, #tpu.memory_space<vmem>>
    %52 = tpu.memref_squeeze %51 : memref<1x1x128xf32, #tpu.memory_space<vmem>> -> memref<1x128xf32, #tpu.memory_space<vmem>>
    %53 = tpu.memref_slice %arg5[%c0_i32_37, %c5_i32_38] : memref<2x8x!tpu.dma_semaphore, #tpu.memory_space<semaphore_mem>> -> memref<1x1x!tpu.dma_semaphore, #tpu.memory_space<semaphore_mem>>
    %54 = tpu.memref_squeeze %53 : memref<1x1x!tpu.dma_semaphore, #tpu.memory_space<semaphore_mem>> -> memref<!tpu.dma_semaphore, #tpu.memory_space<semaphore_mem>>
    tpu.enqueue_dma source(%50 : memref<1x128xf32, #tpu.memory_space<any>>) target(%52 : memref<1x128xf32, #tpu.memory_space<vmem>>) target_semaphore(%54 : memref<!tpu.dma_semaphore, #tpu.memory_space<semaphore_mem>>)
    %c0_i32_42 = arith.constant 0 : i32
    %55 = arith.addi %0, %c0_i32_42 : i32
    %c6_i32 = arith.constant 6 : i32
    %56 = arith.addi %55, %c6_i32 : i32
    %57 = arith.index_cast %56 : i32 to index
    %58 = memref.load %arg1[%57] : memref<64xi32, #tpu.memory_space<smem>>
    %c0_i32_43 = arith.constant 0 : i32
    %c0_i32_44 = arith.constant 0 : i32
    %c6_i32_45 = arith.constant 6 : i32
    %c0_i32_46 = arith.constant 0 : i32
    %59 = tpu.memref_slice %arg2[%58, %c0_i32_46] : memref<640x128xf32, #tpu.memory_space<any>> -> memref<1x128xf32, #tpu.memory_space<any>>
    %c6_i32_47 = arith.constant 6 : i32
    %c0_i32_48 = arith.constant 0 : i32
    %60 = tpu.memref_slice %arg4[%c0_i32_43, %c6_i32_47, %c0_i32_48] : memref<2x8x128xf32, #tpu.memory_space<vmem>> -> memref<1x1x128xf32, #tpu.memory_space<vmem>>
    %61 = tpu.memref_squeeze %60 : memref<1x1x128xf32, #tpu.memory_space<vmem>> -> memref<1x128xf32, #tpu.memory_space<vmem>>
    %62 = tpu.memref_slice %arg5[%c0_i32_44, %c6_i32_45] : memref<2x8x!tpu.dma_semaphore, #tpu.memory_space<semaphore_mem>> -> memref<1x1x!tpu.dma_semaphore, #tpu.memory_space<semaphore_mem>>
    %63 = tpu.memref_squeeze %62 : memref<1x1x!tpu.dma_semaphore, #tpu.memory_space<semaphore_mem>> -> memref<!tpu.dma_semaphore, #tpu.memory_space<semaphore_mem>>
    tpu.enqueue_dma source(%59 : memref<1x128xf32, #tpu.memory_space<any>>) target(%61 : memref<1x128xf32, #tpu.memory_space<vmem>>) target_semaphore(%63 : memref<!tpu.dma_semaphore, #tpu.memory_space<semaphore_mem>>)
    %c0_i32_49 = arith.constant 0 : i32
    %64 = arith.addi %0, %c0_i32_49 : i32
    %c7_i32 = arith.constant 7 : i32
    %65 = arith.addi %64, %c7_i32 : i32
    %66 = arith.index_cast %65 : i32 to index
    %67 = memref.load %arg1[%66] : memref<64xi32, #tpu.memory_space<smem>>
    %c0_i32_50 = arith.constant 0 : i32
    %c0_i32_51 = arith.constant 0 : i32
    %c7_i32_52 = arith.constant 7 : i32
    %c0_i32_53 = arith.constant 0 : i32
    %68 = tpu.memref_slice %arg2[%67, %c0_i32_53] : memref<640x128xf32, #tpu.memory_space<any>> -> memref<1x128xf32, #tpu.memory_space<any>>
    %c7_i32_54 = arith.constant 7 : i32
    %c0_i32_55 = arith.constant 0 : i32
    %69 = tpu.memref_slice %arg4[%c0_i32_50, %c7_i32_54, %c0_i32_55] : memref<2x8x128xf32, #tpu.memory_space<vmem>> -> memref<1x1x128xf32, #tpu.memory_space<vmem>>
    %70 = tpu.memref_squeeze %69 : memref<1x1x128xf32, #tpu.memory_space<vmem>> -> memref<1x128xf32, #tpu.memory_space<vmem>>
    %71 = tpu.memref_slice %arg5[%c0_i32_51, %c7_i32_52] : memref<2x8x!tpu.dma_semaphore, #tpu.memory_space<semaphore_mem>> -> memref<1x1x!tpu.dma_semaphore, #tpu.memory_space<semaphore_mem>>
    %72 = tpu.memref_squeeze %71 : memref<1x1x!tpu.dma_semaphore, #tpu.memory_space<semaphore_mem>> -> memref<!tpu.dma_semaphore, #tpu.memory_space<semaphore_mem>>
    tpu.enqueue_dma source(%68 : memref<1x128xf32, #tpu.memory_space<any>>) target(%70 : memref<1x128xf32, #tpu.memory_space<vmem>>) target_semaphore(%72 : memref<!tpu.dma_semaphore, #tpu.memory_space<semaphore_mem>>)
    %cst = arith.constant 1.250000e-01 : f32
    %c0_i32_56 = arith.constant 0 : i32
    %c8_i32 = arith.constant 8 : i32
    %73 = arith.addi %c0_i32_56, %c8_i32 : i32
    %c1_i32_57 = arith.constant 1 : i32
    scf.for %arg6 = %c0_i32_56 to %73 step %c1_i32_57  : i32 {
      %c1_i32_59 = arith.constant 1 : i32
      %74 = arith.andi %arg6, %c1_i32_59 : i32
      %c8_i32_60 = arith.constant 8 : i32
      %75 = arith.muli %arg6, %c8_i32_60 : i32
      %76 = arith.addi %0, %75 : i32
      %c0_i32_61 = arith.constant 0 : i32
      %77 = arith.addi %76, %c0_i32_61 : i32
      %78 = arith.index_cast %77 : i32 to index
      %79 = memref.load %arg1[%78] : memref<64xi32, #tpu.memory_space<smem>>
      %c8_i32_62 = arith.constant 8 : i32
      %80 = arith.muli %arg6, %c8_i32_62 : i32
      %81 = arith.addi %0, %80 : i32
      %c1_i32_63 = arith.constant 1 : i32
      %82 = arith.addi %81, %c1_i32_63 : i32
      %83 = arith.index_cast %82 : i32 to index
      %84 = memref.load %arg1[%83] : memref<64xi32, #tpu.memory_space<smem>>
      %c8_i32_64 = arith.constant 8 : i32
      %85 = arith.muli %arg6, %c8_i32_64 : i32
      %86 = arith.addi %0, %85 : i32
      %c2_i32_65 = arith.constant 2 : i32
      %87 = arith.addi %86, %c2_i32_65 : i32
      %88 = arith.index_cast %87 : i32 to index
      %89 = memref.load %arg1[%88] : memref<64xi32, #tpu.memory_space<smem>>
      %c8_i32_66 = arith.constant 8 : i32
      %90 = arith.muli %arg6, %c8_i32_66 : i32
      %91 = arith.addi %0, %90 : i32
      %c3_i32_67 = arith.constant 3 : i32
      %92 = arith.addi %91, %c3_i32_67 : i32
      %93 = arith.index_cast %92 : i32 to index
      %94 = memref.load %arg1[%93] : memref<64xi32, #tpu.memory_space<smem>>
      %c8_i32_68 = arith.constant 8 : i32
      %95 = arith.muli %arg6, %c8_i32_68 : i32
      %96 = arith.addi %0, %95 : i32
      %c4_i32_69 = arith.constant 4 : i32
      %97 = arith.addi %96, %c4_i32_69 : i32
      %98 = arith.index_cast %97 : i32 to index
      %99 = memref.load %arg1[%98] : memref<64xi32, #tpu.memory_space<smem>>
      %c8_i32_70 = arith.constant 8 : i32
      %100 = arith.muli %arg6, %c8_i32_70 : i32
      %101 = arith.addi %0, %100 : i32
      %c5_i32_71 = arith.constant 5 : i32
      %102 = arith.addi %101, %c5_i32_71 : i32
      %103 = arith.index_cast %102 : i32 to index
      %104 = memref.load %arg1[%103] : memref<64xi32, #tpu.memory_space<smem>>
      %c8_i32_72 = arith.constant 8 : i32
      %105 = arith.muli %arg6, %c8_i32_72 : i32
      %106 = arith.addi %0, %105 : i32
      %c6_i32_73 = arith.constant 6 : i32
      %107 = arith.addi %106, %c6_i32_73 : i32
      %108 = arith.index_cast %107 : i32 to index
      %109 = memref.load %arg1[%108] : memref<64xi32, #tpu.memory_space<smem>>
      %c8_i32_74 = arith.constant 8 : i32
      %110 = arith.muli %arg6, %c8_i32_74 : i32
      %111 = arith.addi %0, %110 : i32
      %c7_i32_75 = arith.constant 7 : i32
      %112 = arith.addi %111, %c7_i32_75 : i32
      %113 = arith.index_cast %112 : i32 to index
      %114 = memref.load %arg1[%113] : memref<64xi32, #tpu.memory_space<smem>>
      %c0_i32_76 = arith.constant 0 : i32
      %115 = arith.cmpi ne, %79, %c0_i32_76 : i32
      %cst_77 = arith.constant 0.000000e+00 : f32
      %116 = arith.select %115, %cst, %cst_77 : f32
      %c0_i32_78 = arith.constant 0 : i32
      %117 = arith.cmpi ne, %84, %c0_i32_78 : i32
      %cst_79 = arith.constant 0.000000e+00 : f32
      %118 = arith.select %117, %cst, %cst_79 : f32
      %c0_i32_80 = arith.constant 0 : i32
      %119 = arith.cmpi ne, %89, %c0_i32_80 : i32
      %cst_81 = arith.constant 0.000000e+00 : f32
      %120 = arith.select %119, %cst, %cst_81 : f32
      %c0_i32_82 = arith.constant 0 : i32
      %121 = arith.cmpi ne, %94, %c0_i32_82 : i32
      %cst_83 = arith.constant 0.000000e+00 : f32
      %122 = arith.select %121, %cst, %cst_83 : f32
      %c0_i32_84 = arith.constant 0 : i32
      %123 = arith.cmpi ne, %99, %c0_i32_84 : i32
      %cst_85 = arith.constant 0.000000e+00 : f32
      %124 = arith.select %123, %cst, %cst_85 : f32
      %c0_i32_86 = arith.constant 0 : i32
      %125 = arith.cmpi ne, %104, %c0_i32_86 : i32
      %cst_87 = arith.constant 0.000000e+00 : f32
      %126 = arith.select %125, %cst, %cst_87 : f32
      %c0_i32_88 = arith.constant 0 : i32
      %127 = arith.cmpi ne, %109, %c0_i32_88 : i32
      %cst_89 = arith.constant 0.000000e+00 : f32
      %128 = arith.select %127, %cst, %cst_89 : f32
      %c0_i32_90 = arith.constant 0 : i32
      %129 = arith.cmpi ne, %114, %c0_i32_90 : i32
      %cst_91 = arith.constant 0.000000e+00 : f32
      %130 = arith.select %129, %cst, %cst_91 : f32
      %c1_i32_92 = arith.constant 1 : i32
      %131 = arith.addi %arg6, %c1_i32_92 : i32
      %c8_i32_93 = arith.constant 8 : i32
      %132 = arith.cmpi slt, %131, %c8_i32_93 : i32
      %133 = arith.extui %132 : i1 to i32
      %c0_i32_94 = arith.constant 0 : i32
      %134 = arith.cmpi ne, %133, %c0_i32_94 : i32
      scf.if %134 {
        %c1_i32_129 = arith.constant 1 : i32
        %211 = arith.addi %arg6, %c1_i32_129 : i32
        %c1_i32_130 = arith.constant 1 : i32
        %212 = arith.subi %c1_i32_130, %74 : i32
        %c8_i32_131 = arith.constant 8 : i32
        %213 = arith.muli %211, %c8_i32_131 : i32
        %214 = arith.addi %0, %213 : i32
        %c0_i32_132 = arith.constant 0 : i32
        %215 = arith.addi %214, %c0_i32_132 : i32
        %216 = arith.index_cast %215 : i32 to index
        %217 = memref.load %arg1[%216] : memref<64xi32, #tpu.memory_space<smem>>
        %c0_i32_133 = arith.constant 0 : i32
        %c0_i32_134 = arith.constant 0 : i32
        %218 = tpu.memref_slice %arg2[%217, %c0_i32_134] : memref<640x128xf32, #tpu.memory_space<any>> -> memref<1x128xf32, #tpu.memory_space<any>>
        %c0_i32_135 = arith.constant 0 : i32
        %c0_i32_136 = arith.constant 0 : i32
        %219 = tpu.memref_slice %arg4[%212, %c0_i32_135, %c0_i32_136] : memref<2x8x128xf32, #tpu.memory_space<vmem>> -> memref<1x1x128xf32, #tpu.memory_space<vmem>>
        %220 = tpu.memref_squeeze %219 : memref<1x1x128xf32, #tpu.memory_space<vmem>> -> memref<1x128xf32, #tpu.memory_space<vmem>>
        %221 = tpu.memref_slice %arg5[%212, %c0_i32_133] : memref<2x8x!tpu.dma_semaphore, #tpu.memory_space<semaphore_mem>> -> memref<1x1x!tpu.dma_semaphore, #tpu.memory_space<semaphore_mem>>
        %222 = tpu.memref_squeeze %221 : memref<1x1x!tpu.dma_semaphore, #tpu.memory_space<semaphore_mem>> -> memref<!tpu.dma_semaphore, #tpu.memory_space<semaphore_mem>>
        tpu.enqueue_dma source(%218 : memref<1x128xf32, #tpu.memory_space<any>>) target(%220 : memref<1x128xf32, #tpu.memory_space<vmem>>) target_semaphore(%222 : memref<!tpu.dma_semaphore, #tpu.memory_space<semaphore_mem>>)
        %c8_i32_137 = arith.constant 8 : i32
        %223 = arith.muli %211, %c8_i32_137 : i32
        %224 = arith.addi %0, %223 : i32
        %c1_i32_138 = arith.constant 1 : i32
        %225 = arith.addi %224, %c1_i32_138 : i32
        %226 = arith.index_cast %225 : i32 to index
        %227 = memref.load %arg1[%226] : memref<64xi32, #tpu.memory_space<smem>>
        %c1_i32_139 = arith.constant 1 : i32
        %c0_i32_140 = arith.constant 0 : i32
        %228 = tpu.memref_slice %arg2[%227, %c0_i32_140] : memref<640x128xf32, #tpu.memory_space<any>> -> memref<1x128xf32, #tpu.memory_space<any>>
        %c1_i32_141 = arith.constant 1 : i32
        %c0_i32_142 = arith.constant 0 : i32
        %229 = tpu.memref_slice %arg4[%212, %c1_i32_141, %c0_i32_142] : memref<2x8x128xf32, #tpu.memory_space<vmem>> -> memref<1x1x128xf32, #tpu.memory_space<vmem>>
        %230 = tpu.memref_squeeze %229 : memref<1x1x128xf32, #tpu.memory_space<vmem>> -> memref<1x128xf32, #tpu.memory_space<vmem>>
        %231 = tpu.memref_slice %arg5[%212, %c1_i32_139] : memref<2x8x!tpu.dma_semaphore, #tpu.memory_space<semaphore_mem>> -> memref<1x1x!tpu.dma_semaphore, #tpu.memory_space<semaphore_mem>>
        %232 = tpu.memref_squeeze %231 : memref<1x1x!tpu.dma_semaphore, #tpu.memory_space<semaphore_mem>> -> memref<!tpu.dma_semaphore, #tpu.memory_space<semaphore_mem>>
        tpu.enqueue_dma source(%228 : memref<1x128xf32, #tpu.memory_space<any>>) target(%230 : memref<1x128xf32, #tpu.memory_space<vmem>>) target_semaphore(%232 : memref<!tpu.dma_semaphore, #tpu.memory_space<semaphore_mem>>)
        %c8_i32_143 = arith.constant 8 : i32
        %233 = arith.muli %211, %c8_i32_143 : i32
        %234 = arith.addi %0, %233 : i32
        %c2_i32_144 = arith.constant 2 : i32
        %235 = arith.addi %234, %c2_i32_144 : i32
        %236 = arith.index_cast %235 : i32 to index
        %237 = memref.load %arg1[%236] : memref<64xi32, #tpu.memory_space<smem>>
        %c2_i32_145 = arith.constant 2 : i32
        %c0_i32_146 = arith.constant 0 : i32
        %238 = tpu.memref_slice %arg2[%237, %c0_i32_146] : memref<640x128xf32, #tpu.memory_space<any>> -> memref<1x128xf32, #tpu.memory_space<any>>
        %c2_i32_147 = arith.constant 2 : i32
        %c0_i32_148 = arith.constant 0 : i32
        %239 = tpu.memref_slice %arg4[%212, %c2_i32_147, %c0_i32_148] : memref<2x8x128xf32, #tpu.memory_space<vmem>> -> memref<1x1x128xf32, #tpu.memory_space<vmem>>
        %240 = tpu.memref_squeeze %239 : memref<1x1x128xf32, #tpu.memory_space<vmem>> -> memref<1x128xf32, #tpu.memory_space<vmem>>
        %241 = tpu.memref_slice %arg5[%212, %c2_i32_145] : memref<2x8x!tpu.dma_semaphore, #tpu.memory_space<semaphore_mem>> -> memref<1x1x!tpu.dma_semaphore, #tpu.memory_space<semaphore_mem>>
        %242 = tpu.memref_squeeze %241 : memref<1x1x!tpu.dma_semaphore, #tpu.memory_space<semaphore_mem>> -> memref<!tpu.dma_semaphore, #tpu.memory_space<semaphore_mem>>
        tpu.enqueue_dma source(%238 : memref<1x128xf32, #tpu.memory_space<any>>) target(%240 : memref<1x128xf32, #tpu.memory_space<vmem>>) target_semaphore(%242 : memref<!tpu.dma_semaphore, #tpu.memory_space<semaphore_mem>>)
        %c8_i32_149 = arith.constant 8 : i32
        %243 = arith.muli %211, %c8_i32_149 : i32
        %244 = arith.addi %0, %243 : i32
        %c3_i32_150 = arith.constant 3 : i32
        %245 = arith.addi %244, %c3_i32_150 : i32
        %246 = arith.index_cast %245 : i32 to index
        %247 = memref.load %arg1[%246] : memref<64xi32, #tpu.memory_space<smem>>
        %c3_i32_151 = arith.constant 3 : i32
        %c0_i32_152 = arith.constant 0 : i32
        %248 = tpu.memref_slice %arg2[%247, %c0_i32_152] : memref<640x128xf32, #tpu.memory_space<any>> -> memref<1x128xf32, #tpu.memory_space<any>>
        %c3_i32_153 = arith.constant 3 : i32
        %c0_i32_154 = arith.constant 0 : i32
        %249 = tpu.memref_slice %arg4[%212, %c3_i32_153, %c0_i32_154] : memref<2x8x128xf32, #tpu.memory_space<vmem>> -> memref<1x1x128xf32, #tpu.memory_space<vmem>>
        %250 = tpu.memref_squeeze %249 : memref<1x1x128xf32, #tpu.memory_space<vmem>> -> memref<1x128xf32, #tpu.memory_space<vmem>>
        %251 = tpu.memref_slice %arg5[%212, %c3_i32_151] : memref<2x8x!tpu.dma_semaphore, #tpu.memory_space<semaphore_mem>> -> memref<1x1x!tpu.dma_semaphore, #tpu.memory_space<semaphore_mem>>
        %252 = tpu.memref_squeeze %251 : memref<1x1x!tpu.dma_semaphore, #tpu.memory_space<semaphore_mem>> -> memref<!tpu.dma_semaphore, #tpu.memory_space<semaphore_mem>>
        tpu.enqueue_dma source(%248 : memref<1x128xf32, #tpu.memory_space<any>>) target(%250 : memref<1x128xf32, #tpu.memory_space<vmem>>) target_semaphore(%252 : memref<!tpu.dma_semaphore, #tpu.memory_space<semaphore_mem>>)
        %c8_i32_155 = arith.constant 8 : i32
        %253 = arith.muli %211, %c8_i32_155 : i32
        %254 = arith.addi %0, %253 : i32
        %c4_i32_156 = arith.constant 4 : i32
        %255 = arith.addi %254, %c4_i32_156 : i32
        %256 = arith.index_cast %255 : i32 to index
        %257 = memref.load %arg1[%256] : memref<64xi32, #tpu.memory_space<smem>>
        %c4_i32_157 = arith.constant 4 : i32
        %c0_i32_158 = arith.constant 0 : i32
        %258 = tpu.memref_slice %arg2[%257, %c0_i32_158] : memref<640x128xf32, #tpu.memory_space<any>> -> memref<1x128xf32, #tpu.memory_space<any>>
        %c4_i32_159 = arith.constant 4 : i32
        %c0_i32_160 = arith.constant 0 : i32
        %259 = tpu.memref_slice %arg4[%212, %c4_i32_159, %c0_i32_160] : memref<2x8x128xf32, #tpu.memory_space<vmem>> -> memref<1x1x128xf32, #tpu.memory_space<vmem>>
        %260 = tpu.memref_squeeze %259 : memref<1x1x128xf32, #tpu.memory_space<vmem>> -> memref<1x128xf32, #tpu.memory_space<vmem>>
        %261 = tpu.memref_slice %arg5[%212, %c4_i32_157] : memref<2x8x!tpu.dma_semaphore, #tpu.memory_space<semaphore_mem>> -> memref<1x1x!tpu.dma_semaphore, #tpu.memory_space<semaphore_mem>>
        %262 = tpu.memref_squeeze %261 : memref<1x1x!tpu.dma_semaphore, #tpu.memory_space<semaphore_mem>> -> memref<!tpu.dma_semaphore, #tpu.memory_space<semaphore_mem>>
        tpu.enqueue_dma source(%258 : memref<1x128xf32, #tpu.memory_space<any>>) target(%260 : memref<1x128xf32, #tpu.memory_space<vmem>>) target_semaphore(%262 : memref<!tpu.dma_semaphore, #tpu.memory_space<semaphore_mem>>)
        %c8_i32_161 = arith.constant 8 : i32
        %263 = arith.muli %211, %c8_i32_161 : i32
        %264 = arith.addi %0, %263 : i32
        %c5_i32_162 = arith.constant 5 : i32
        %265 = arith.addi %264, %c5_i32_162 : i32
        %266 = arith.index_cast %265 : i32 to index
        %267 = memref.load %arg1[%266] : memref<64xi32, #tpu.memory_space<smem>>
        %c5_i32_163 = arith.constant 5 : i32
        %c0_i32_164 = arith.constant 0 : i32
        %268 = tpu.memref_slice %arg2[%267, %c0_i32_164] : memref<640x128xf32, #tpu.memory_space<any>> -> memref<1x128xf32, #tpu.memory_space<any>>
        %c5_i32_165 = arith.constant 5 : i32
        %c0_i32_166 = arith.constant 0 : i32
        %269 = tpu.memref_slice %arg4[%212, %c5_i32_165, %c0_i32_166] : memref<2x8x128xf32, #tpu.memory_space<vmem>> -> memref<1x1x128xf32, #tpu.memory_space<vmem>>
        %270 = tpu.memref_squeeze %269 : memref<1x1x128xf32, #tpu.memory_space<vmem>> -> memref<1x128xf32, #tpu.memory_space<vmem>>
        %271 = tpu.memref_slice %arg5[%212, %c5_i32_163] : memref<2x8x!tpu.dma_semaphore, #tpu.memory_space<semaphore_mem>> -> memref<1x1x!tpu.dma_semaphore, #tpu.memory_space<semaphore_mem>>
        %272 = tpu.memref_squeeze %271 : memref<1x1x!tpu.dma_semaphore, #tpu.memory_space<semaphore_mem>> -> memref<!tpu.dma_semaphore, #tpu.memory_space<semaphore_mem>>
        tpu.enqueue_dma source(%268 : memref<1x128xf32, #tpu.memory_space<any>>) target(%270 : memref<1x128xf32, #tpu.memory_space<vmem>>) target_semaphore(%272 : memref<!tpu.dma_semaphore, #tpu.memory_space<semaphore_mem>>)
        %c8_i32_167 = arith.constant 8 : i32
        %273 = arith.muli %211, %c8_i32_167 : i32
        %274 = arith.addi %0, %273 : i32
        %c6_i32_168 = arith.constant 6 : i32
        %275 = arith.addi %274, %c6_i32_168 : i32
        %276 = arith.index_cast %275 : i32 to index
        %277 = memref.load %arg1[%276] : memref<64xi32, #tpu.memory_space<smem>>
        %c6_i32_169 = arith.constant 6 : i32
        %c0_i32_170 = arith.constant 0 : i32
        %278 = tpu.memref_slice %arg2[%277, %c0_i32_170] : memref<640x128xf32, #tpu.memory_space<any>> -> memref<1x128xf32, #tpu.memory_space<any>>
        %c6_i32_171 = arith.constant 6 : i32
        %c0_i32_172 = arith.constant 0 : i32
        %279 = tpu.memref_slice %arg4[%212, %c6_i32_171, %c0_i32_172] : memref<2x8x128xf32, #tpu.memory_space<vmem>> -> memref<1x1x128xf32, #tpu.memory_space<vmem>>
        %280 = tpu.memref_squeeze %279 : memref<1x1x128xf32, #tpu.memory_space<vmem>> -> memref<1x128xf32, #tpu.memory_space<vmem>>
        %281 = tpu.memref_slice %arg5[%212, %c6_i32_169] : memref<2x8x!tpu.dma_semaphore, #tpu.memory_space<semaphore_mem>> -> memref<1x1x!tpu.dma_semaphore, #tpu.memory_space<semaphore_mem>>
        %282 = tpu.memref_squeeze %281 : memref<1x1x!tpu.dma_semaphore, #tpu.memory_space<semaphore_mem>> -> memref<!tpu.dma_semaphore, #tpu.memory_space<semaphore_mem>>
        tpu.enqueue_dma source(%278 : memref<1x128xf32, #tpu.memory_space<any>>) target(%280 : memref<1x128xf32, #tpu.memory_space<vmem>>) target_semaphore(%282 : memref<!tpu.dma_semaphore, #tpu.memory_space<semaphore_mem>>)
        %c8_i32_173 = arith.constant 8 : i32
        %283 = arith.muli %211, %c8_i32_173 : i32
        %284 = arith.addi %0, %283 : i32
        %c7_i32_174 = arith.constant 7 : i32
        %285 = arith.addi %284, %c7_i32_174 : i32
        %286 = arith.index_cast %285 : i32 to index
        %287 = memref.load %arg1[%286] : memref<64xi32, #tpu.memory_space<smem>>
        %c7_i32_175 = arith.constant 7 : i32
        %c0_i32_176 = arith.constant 0 : i32
        %288 = tpu.memref_slice %arg2[%287, %c0_i32_176] : memref<640x128xf32, #tpu.memory_space<any>> -> memref<1x128xf32, #tpu.memory_space<any>>
        %c7_i32_177 = arith.constant 7 : i32
        %c0_i32_178 = arith.constant 0 : i32
        %289 = tpu.memref_slice %arg4[%212, %c7_i32_177, %c0_i32_178] : memref<2x8x128xf32, #tpu.memory_space<vmem>> -> memref<1x1x128xf32, #tpu.memory_space<vmem>>
        %290 = tpu.memref_squeeze %289 : memref<1x1x128xf32, #tpu.memory_space<vmem>> -> memref<1x128xf32, #tpu.memory_space<vmem>>
        %291 = tpu.memref_slice %arg5[%212, %c7_i32_175] : memref<2x8x!tpu.dma_semaphore, #tpu.memory_space<semaphore_mem>> -> memref<1x1x!tpu.dma_semaphore, #tpu.memory_space<semaphore_mem>>
        %292 = tpu.memref_squeeze %291 : memref<1x1x!tpu.dma_semaphore, #tpu.memory_space<semaphore_mem>> -> memref<!tpu.dma_semaphore, #tpu.memory_space<semaphore_mem>>
        tpu.enqueue_dma source(%288 : memref<1x128xf32, #tpu.memory_space<any>>) target(%290 : memref<1x128xf32, #tpu.memory_space<vmem>>) target_semaphore(%292 : memref<!tpu.dma_semaphore, #tpu.memory_space<semaphore_mem>>)
      } else {
      }
      %c0_i32_95 = arith.constant 0 : i32
      %c0_i32_96 = arith.constant 0 : i32
      %135 = tpu.memref_slice %arg2[%79, %c0_i32_96] : memref<640x128xf32, #tpu.memory_space<any>> -> memref<1x128xf32, #tpu.memory_space<any>>
      %c0_i32_97 = arith.constant 0 : i32
      %c0_i32_98 = arith.constant 0 : i32
      %136 = tpu.memref_slice %arg4[%74, %c0_i32_97, %c0_i32_98] : memref<2x8x128xf32, #tpu.memory_space<vmem>> -> memref<1x1x128xf32, #tpu.memory_space<vmem>>
      %137 = tpu.memref_squeeze %136 : memref<1x1x128xf32, #tpu.memory_space<vmem>> -> memref<1x128xf32, #tpu.memory_space<vmem>>
      %138 = tpu.memref_slice %arg5[%74, %c0_i32_95] : memref<2x8x!tpu.dma_semaphore, #tpu.memory_space<semaphore_mem>> -> memref<1x1x!tpu.dma_semaphore, #tpu.memory_space<semaphore_mem>>
      %139 = tpu.memref_squeeze %138 : memref<1x1x!tpu.dma_semaphore, #tpu.memory_space<semaphore_mem>> -> memref<!tpu.dma_semaphore, #tpu.memory_space<semaphore_mem>>
      tpu.wait_dma2 semaphore(%139 : memref<!tpu.dma_semaphore, #tpu.memory_space<semaphore_mem>>) src(%135 : memref<1x128xf32, #tpu.memory_space<any>>) dst(%137 : memref<1x128xf32, #tpu.memory_space<vmem>>)
      %c1_i32_99 = arith.constant 1 : i32
      %c0_i32_100 = arith.constant 0 : i32
      %140 = tpu.memref_slice %arg2[%84, %c0_i32_100] : memref<640x128xf32, #tpu.memory_space<any>> -> memref<1x128xf32, #tpu.memory_space<any>>
      %c1_i32_101 = arith.constant 1 : i32
      %c0_i32_102 = arith.constant 0 : i32
      %141 = tpu.memref_slice %arg4[%74, %c1_i32_101, %c0_i32_102] : memref<2x8x128xf32, #tpu.memory_space<vmem>> -> memref<1x1x128xf32, #tpu.memory_space<vmem>>
      %142 = tpu.memref_squeeze %141 : memref<1x1x128xf32, #tpu.memory_space<vmem>> -> memref<1x128xf32, #tpu.memory_space<vmem>>
      %143 = tpu.memref_slice %arg5[%74, %c1_i32_99] : memref<2x8x!tpu.dma_semaphore, #tpu.memory_space<semaphore_mem>> -> memref<1x1x!tpu.dma_semaphore, #tpu.memory_space<semaphore_mem>>
      %144 = tpu.memref_squeeze %143 : memref<1x1x!tpu.dma_semaphore, #tpu.memory_space<semaphore_mem>> -> memref<!tpu.dma_semaphore, #tpu.memory_space<semaphore_mem>>
      tpu.wait_dma2 semaphore(%144 : memref<!tpu.dma_semaphore, #tpu.memory_space<semaphore_mem>>) src(%140 : memref<1x128xf32, #tpu.memory_space<any>>) dst(%142 : memref<1x128xf32, #tpu.memory_space<vmem>>)
      %c2_i32_103 = arith.constant 2 : i32
      %c0_i32_104 = arith.constant 0 : i32
      %145 = tpu.memref_slice %arg2[%89, %c0_i32_104] : memref<640x128xf32, #tpu.memory_space<any>> -> memref<1x128xf32, #tpu.memory_space<any>>
      %c2_i32_105 = arith.constant 2 : i32
      %c0_i32_106 = arith.constant 0 : i32
      %146 = tpu.memref_slice %arg4[%74, %c2_i32_105, %c0_i32_106] : memref<2x8x128xf32, #tpu.memory_space<vmem>> -> memref<1x1x128xf32, #tpu.memory_space<vmem>>
      %147 = tpu.memref_squeeze %146 : memref<1x1x128xf32, #tpu.memory_space<vmem>> -> memref<1x128xf32, #tpu.memory_space<vmem>>
      %148 = tpu.memref_slice %arg5[%74, %c2_i32_103] : memref<2x8x!tpu.dma_semaphore, #tpu.memory_space<semaphore_mem>> -> memref<1x1x!tpu.dma_semaphore, #tpu.memory_space<semaphore_mem>>
      %149 = tpu.memref_squeeze %148 : memref<1x1x!tpu.dma_semaphore, #tpu.memory_space<semaphore_mem>> -> memref<!tpu.dma_semaphore, #tpu.memory_space<semaphore_mem>>
      tpu.wait_dma2 semaphore(%149 : memref<!tpu.dma_semaphore, #tpu.memory_space<semaphore_mem>>) src(%145 : memref<1x128xf32, #tpu.memory_space<any>>) dst(%147 : memref<1x128xf32, #tpu.memory_space<vmem>>)
      %c3_i32_107 = arith.constant 3 : i32
      %c0_i32_108 = arith.constant 0 : i32
      %150 = tpu.memref_slice %arg2[%94, %c0_i32_108] : memref<640x128xf32, #tpu.memory_space<any>> -> memref<1x128xf32, #tpu.memory_space<any>>
      %c3_i32_109 = arith.constant 3 : i32
      %c0_i32_110 = arith.constant 0 : i32
      %151 = tpu.memref_slice %arg4[%74, %c3_i32_109, %c0_i32_110] : memref<2x8x128xf32, #tpu.memory_space<vmem>> -> memref<1x1x128xf32, #tpu.memory_space<vmem>>
      %152 = tpu.memref_squeeze %151 : memref<1x1x128xf32, #tpu.memory_space<vmem>> -> memref<1x128xf32, #tpu.memory_space<vmem>>
      %153 = tpu.memref_slice %arg5[%74, %c3_i32_107] : memref<2x8x!tpu.dma_semaphore, #tpu.memory_space<semaphore_mem>> -> memref<1x1x!tpu.dma_semaphore, #tpu.memory_space<semaphore_mem>>
      %154 = tpu.memref_squeeze %153 : memref<1x1x!tpu.dma_semaphore, #tpu.memory_space<semaphore_mem>> -> memref<!tpu.dma_semaphore, #tpu.memory_space<semaphore_mem>>
      tpu.wait_dma2 semaphore(%154 : memref<!tpu.dma_semaphore, #tpu.memory_space<semaphore_mem>>) src(%150 : memref<1x128xf32, #tpu.memory_space<any>>) dst(%152 : memref<1x128xf32, #tpu.memory_space<vmem>>)
      %c4_i32_111 = arith.constant 4 : i32
      %c0_i32_112 = arith.constant 0 : i32
      %155 = tpu.memref_slice %arg2[%99, %c0_i32_112] : memref<640x128xf32, #tpu.memory_space<any>> -> memref<1x128xf32, #tpu.memory_space<any>>
      %c4_i32_113 = arith.constant 4 : i32
      %c0_i32_114 = arith.constant 0 : i32
      %156 = tpu.memref_slice %arg4[%74, %c4_i32_113, %c0_i32_114] : memref<2x8x128xf32, #tpu.memory_space<vmem>> -> memref<1x1x128xf32, #tpu.memory_space<vmem>>
      %157 = tpu.memref_squeeze %156 : memref<1x1x128xf32, #tpu.memory_space<vmem>> -> memref<1x128xf32, #tpu.memory_space<vmem>>
      %158 = tpu.memref_slice %arg5[%74, %c4_i32_111] : memref<2x8x!tpu.dma_semaphore, #tpu.memory_space<semaphore_mem>> -> memref<1x1x!tpu.dma_semaphore, #tpu.memory_space<semaphore_mem>>
      %159 = tpu.memref_squeeze %158 : memref<1x1x!tpu.dma_semaphore, #tpu.memory_space<semaphore_mem>> -> memref<!tpu.dma_semaphore, #tpu.memory_space<semaphore_mem>>
      tpu.wait_dma2 semaphore(%159 : memref<!tpu.dma_semaphore, #tpu.memory_space<semaphore_mem>>) src(%155 : memref<1x128xf32, #tpu.memory_space<any>>) dst(%157 : memref<1x128xf32, #tpu.memory_space<vmem>>)
      %c5_i32_115 = arith.constant 5 : i32
      %c0_i32_116 = arith.constant 0 : i32
      %160 = tpu.memref_slice %arg2[%104, %c0_i32_116] : memref<640x128xf32, #tpu.memory_space<any>> -> memref<1x128xf32, #tpu.memory_space<any>>
      %c5_i32_117 = arith.constant 5 : i32
      %c0_i32_118 = arith.constant 0 : i32
      %161 = tpu.memref_slice %arg4[%74, %c5_i32_117, %c0_i32_118] : memref<2x8x128xf32, #tpu.memory_space<vmem>> -> memref<1x1x128xf32, #tpu.memory_space<vmem>>
      %162 = tpu.memref_squeeze %161 : memref<1x1x128xf32, #tpu.memory_space<vmem>> -> memref<1x128xf32, #tpu.memory_space<vmem>>
      %163 = tpu.memref_slice %arg5[%74, %c5_i32_115] : memref<2x8x!tpu.dma_semaphore, #tpu.memory_space<semaphore_mem>> -> memref<1x1x!tpu.dma_semaphore, #tpu.memory_space<semaphore_mem>>
      %164 = tpu.memref_squeeze %163 : memref<1x1x!tpu.dma_semaphore, #tpu.memory_space<semaphore_mem>> -> memref<!tpu.dma_semaphore, #tpu.memory_space<semaphore_mem>>
      tpu.wait_dma2 semaphore(%164 : memref<!tpu.dma_semaphore, #tpu.memory_space<semaphore_mem>>) src(%160 : memref<1x128xf32, #tpu.memory_space<any>>) dst(%162 : memref<1x128xf32, #tpu.memory_space<vmem>>)
      %c6_i32_119 = arith.constant 6 : i32
      %c0_i32_120 = arith.constant 0 : i32
      %165 = tpu.memref_slice %arg2[%109, %c0_i32_120] : memref<640x128xf32, #tpu.memory_space<any>> -> memref<1x128xf32, #tpu.memory_space<any>>
      %c6_i32_121 = arith.constant 6 : i32
      %c0_i32_122 = arith.constant 0 : i32
      %166 = tpu.memref_slice %arg4[%74, %c6_i32_121, %c0_i32_122] : memref<2x8x128xf32, #tpu.memory_space<vmem>> -> memref<1x1x128xf32, #tpu.memory_space<vmem>>
      %167 = tpu.memref_squeeze %166 : memref<1x1x128xf32, #tpu.memory_space<vmem>> -> memref<1x128xf32, #tpu.memory_space<vmem>>
      %168 = tpu.memref_slice %arg5[%74, %c6_i32_119] : memref<2x8x!tpu.dma_semaphore, #tpu.memory_space<semaphore_mem>> -> memref<1x1x!tpu.dma_semaphore, #tpu.memory_space<semaphore_mem>>
      %169 = tpu.memref_squeeze %168 : memref<1x1x!tpu.dma_semaphore, #tpu.memory_space<semaphore_mem>> -> memref<!tpu.dma_semaphore, #tpu.memory_space<semaphore_mem>>
      tpu.wait_dma2 semaphore(%169 : memref<!tpu.dma_semaphore, #tpu.memory_space<semaphore_mem>>) src(%165 : memref<1x128xf32, #tpu.memory_space<any>>) dst(%167 : memref<1x128xf32, #tpu.memory_space<vmem>>)
      %c7_i32_123 = arith.constant 7 : i32
      %c0_i32_124 = arith.constant 0 : i32
      %170 = tpu.memref_slice %arg2[%114, %c0_i32_124] : memref<640x128xf32, #tpu.memory_space<any>> -> memref<1x128xf32, #tpu.memory_space<any>>
      %c7_i32_125 = arith.constant 7 : i32
      %c0_i32_126 = arith.constant 0 : i32
      %171 = tpu.memref_slice %arg4[%74, %c7_i32_125, %c0_i32_126] : memref<2x8x128xf32, #tpu.memory_space<vmem>> -> memref<1x1x128xf32, #tpu.memory_space<vmem>>
      %172 = tpu.memref_squeeze %171 : memref<1x1x128xf32, #tpu.memory_space<vmem>> -> memref<1x128xf32, #tpu.memory_space<vmem>>
      %173 = tpu.memref_slice %arg5[%74, %c7_i32_123] : memref<2x8x!tpu.dma_semaphore, #tpu.memory_space<semaphore_mem>> -> memref<1x1x!tpu.dma_semaphore, #tpu.memory_space<semaphore_mem>>
      %174 = tpu.memref_squeeze %173 : memref<1x1x!tpu.dma_semaphore, #tpu.memory_space<semaphore_mem>> -> memref<!tpu.dma_semaphore, #tpu.memory_space<semaphore_mem>>
      tpu.wait_dma2 semaphore(%174 : memref<!tpu.dma_semaphore, #tpu.memory_space<semaphore_mem>>) src(%170 : memref<1x128xf32, #tpu.memory_space<any>>) dst(%172 : memref<1x128xf32, #tpu.memory_space<vmem>>)
      %175 = arith.index_cast %74 : i32 to index
      %c0 = arith.constant 0 : index
      %c0_127 = arith.constant 0 : index
      %176 = vector.load %arg4[%175, %c0, %c0_127] : memref<2x8x128xf32, #tpu.memory_space<vmem>>, vector<1x8x128xf32>
      %177 = vector.shape_cast %176 : vector<1x8x128xf32> to vector<8x128xf32>
      %178 = vector.extract_strided_slice %177 {offsets = [0, 0], sizes = [1, 128], strides = [1, 1]} : vector<8x128xf32> to vector<1x128xf32>
      %179 = vector.broadcast %116 : f32 to vector<1x128xf32>
      %180 = arith.mulf %178, %179 : vector<1x128xf32>
      %181 = vector.extract_strided_slice %177 {offsets = [1, 0], sizes = [1, 128], strides = [1, 1]} : vector<8x128xf32> to vector<1x128xf32>
      %182 = vector.broadcast %118 : f32 to vector<1x128xf32>
      %183 = arith.mulf %181, %182 : vector<1x128xf32>
      %184 = arith.addf %180, %183 : vector<1x128xf32>
      %185 = vector.extract_strided_slice %177 {offsets = [2, 0], sizes = [1, 128], strides = [1, 1]} : vector<8x128xf32> to vector<1x128xf32>
      %186 = vector.broadcast %120 : f32 to vector<1x128xf32>
      %187 = arith.mulf %185, %186 : vector<1x128xf32>
      %188 = arith.addf %184, %187 : vector<1x128xf32>
      %189 = vector.extract_strided_slice %177 {offsets = [3, 0], sizes = [1, 128], strides = [1, 1]} : vector<8x128xf32> to vector<1x128xf32>
      %190 = vector.broadcast %122 : f32 to vector<1x128xf32>
      %191 = arith.mulf %189, %190 : vector<1x128xf32>
      %192 = arith.addf %188, %191 : vector<1x128xf32>
      %193 = vector.extract_strided_slice %177 {offsets = [4, 0], sizes = [1, 128], strides = [1, 1]} : vector<8x128xf32> to vector<1x128xf32>
      %194 = vector.broadcast %124 : f32 to vector<1x128xf32>
      %195 = arith.mulf %193, %194 : vector<1x128xf32>
      %196 = arith.addf %192, %195 : vector<1x128xf32>
      %197 = vector.extract_strided_slice %177 {offsets = [5, 0], sizes = [1, 128], strides = [1, 1]} : vector<8x128xf32> to vector<1x128xf32>
      %198 = vector.broadcast %126 : f32 to vector<1x128xf32>
      %199 = arith.mulf %197, %198 : vector<1x128xf32>
      %200 = arith.addf %196, %199 : vector<1x128xf32>
      %201 = vector.extract_strided_slice %177 {offsets = [6, 0], sizes = [1, 128], strides = [1, 1]} : vector<8x128xf32> to vector<1x128xf32>
      %202 = vector.broadcast %128 : f32 to vector<1x128xf32>
      %203 = arith.mulf %201, %202 : vector<1x128xf32>
      %204 = arith.addf %200, %203 : vector<1x128xf32>
      %205 = vector.extract_strided_slice %177 {offsets = [7, 0], sizes = [1, 128], strides = [1, 1]} : vector<8x128xf32> to vector<1x128xf32>
      %206 = vector.broadcast %130 : f32 to vector<1x128xf32>
      %207 = arith.mulf %205, %206 : vector<1x128xf32>
      %208 = arith.addf %204, %207 : vector<1x128xf32>
      %209 = arith.index_cast %arg6 : i32 to index
      %c0_128 = arith.constant 0 : index
      %210 = vector.load %arg3[%209, %c0_128] : memref<8x128xf32, #tpu.memory_space<vmem>>, vector<1x128xf32>
      tpu.vector_store %arg3[%209, %c0_128], %208 {strides = array<i32>} : memref<8x128xf32, #tpu.memory_space<vmem>>, vector<1x128xf32>,
    }
    %c8_i32_58 = arith.constant 8 : i32
    return
  }
  func.func @transform_1(%arg0: i32, %arg1: memref<64xi32, #tpu.memory_space<smem>>) -> (i32, i32) {
    %c0_i32 = arith.constant 0 : i32
    %c0_i32_0 = arith.constant 0 : i32
    return %arg0, %c0_i32 : i32, i32
  }
}

</mosaic_0001>

<llo_original>
// kernel: tpu_custom_call.1
$region0: #{tpu_custom_call.1}
  #allocation0 [shape = 'u32[]', space=smem, size = 0x4, offset = 0x4, fixed_abs, tag = 'smem constant byte address 0x4 - core index']
  #allocation1 [shape = 'u32[144,128]{1,0:T(1,128)}', space=vmem, size = 0x12000, scoped, tag = 'internal scratch']
  #allocation2 [shape = 'f32[2,8,128]{2,1,0:T(8,128)}', space=vmem, size = 0x2000, scoped, tag = 'scratch operand']
  #allocation3 [shape = 's32[16]{0}', space=sflag, size = 0x40, scoped, tag = 'scratch operand']
  #allocation4 [shape = 's32[1]{0}', space=sflag, size = 0x4, scoped, tag = 'scoped memory for tpu_custom_call.1']
  #allocation5 [shape = 'u8[512]{0}', space=smem, size = 0x200, scoped, tag = 'prefetched SMEM operand 0']
  #allocation8 [shape = 's32[]', space=sflag, size = 0x4, offset = 0, fixed_abs, tag = 'sflag constant byte address 0x0 - dummy sync flag']
  #allocation9 [shape = 's32[]', space=sflag, size = 0x4, offset = 0, fixed_abs, tag = 'sflag constant byte address 0x0 - dummy sync flag']
  #allocation10 [shape = 'u32[]', space=smem, size = 0x4, offset = 0x44, fixed_abs, tag = 'smem constant byte address 0x44 - assertion arg 0']
  #allocation11 [shape = 'u32[]', space=smem, size = 0x4, offset = 0x48, fixed_abs, tag = 'smem constant byte address 0x48 - assertion arg 1']
  #allocation12 [shape = 's32[]', space=sflag, size = 0x4, offset = 0, fixed_abs, tag = 'sflag constant byte address 0x0 - dummy sync flag']
  #allocation13 [shape = 's32[]', space=sflag, size = 0x4, offset = 0, fixed_abs, tag = 'sflag constant byte address 0x0 - dummy sync flag']
  #allocation14 [shape = 's32[]', space=sflag, size = 0x4, offset = 0, fixed_abs, tag = 'sflag constant byte address 0x0 - dummy sync flag']
  #allocation15 [shape = 's32[]', space=sflag, size = 0x4, offset = 0, fixed_abs, tag = 'sflag constant byte address 0x0 - dummy sync flag']
  #allocation16 [shape = 's32[]', space=sflag, size = 0x4, offset = 0, fixed_abs, tag = 'sflag constant byte address 0x0 - dummy sync flag']
  #allocation17 [shape = 's32[]', space=sflag, size = 0x4, offset = 0, fixed_abs, tag = 'sflag constant byte address 0x0 - dummy sync flag']
  #allocation18 [shape = 's32[]', space=sflag, size = 0x4, offset = 0, fixed_abs, tag = 'sflag constant byte address 0x0 - dummy sync flag']
  #allocation19 [shape = 's32[]', space=sflag, size = 0x4, offset = 0, fixed_abs, tag = 'sflag constant byte address 0x0 - dummy sync flag']
  #allocation20 [shape = 's32[]', space=sflag, size = 0x4, offset = 0, fixed_abs, tag = 'sflag constant byte address 0x0 - dummy sync flag']
  #allocation21 [shape = 's32[]', space=sflag, size = 0x4, offset = 0, fixed_abs, tag = 'sflag constant byte address 0x0 - dummy sync flag']
  #allocation22 [shape = 's32[]', space=sflag, size = 0x4, offset = 0, fixed_abs, tag = 'sflag constant byte address 0x0 - dummy sync flag']
  #allocation23 [shape = 's32[]', space=sflag, size = 0x4, offset = 0, fixed_abs, tag = 'sflag constant byte address 0x0 - dummy sync flag']
  #allocation24 [shape = 's32[]', space=sflag, size = 0x4, offset = 0, fixed_abs, tag = 'sflag constant byte address 0x0 - dummy sync flag']
  #allocation25 [shape = 's32[]', space=sflag, size = 0x4, offset = 0, fixed_abs, tag = 'sflag constant byte address 0x0 - dummy sync flag']
  #allocation26 [shape = 's32[]', space=sflag, size = 0x4, offset = 0, fixed_abs, tag = 'sflag constant byte address 0x0 - dummy sync flag']
  #allocation27 [shape = 's32[]', space=sflag, size = 0x4, offset = 0, fixed_abs, tag = 'sflag constant byte address 0x0 - dummy sync flag']
  #allocation28 [shape = 's32[]', space=sflag, size = 0x4, offset = 0, fixed_abs, tag = 'sflag constant byte address 0x0 - dummy sync flag']
  #allocation29 [shape = 's32[]', space=sflag, size = 0x4, offset = 0, fixed_abs, tag = 'sflag constant byte address 0x0 - dummy sync flag']
  #allocation30 [shape = 's32[]', space=sflag, size = 0x4, offset = 0, fixed_abs, tag = 'sflag constant byte address 0x0 - dummy sync flag']
  #allocation31 [shape = 's32[]', space=sflag, size = 0x4, offset = 0, fixed_abs, tag = 'sflag constant byte address 0x0 - dummy sync flag']
  #allocation32 [shape = 's32[]', space=sflag, size = 0x4, offset = 0, fixed_abs, tag = 'sflag constant byte address 0x0 - dummy sync flag']
  #allocation33 [shape = 's32[]', space=sflag, size = 0x4, offset = 0, fixed_abs, tag = 'sflag constant byte address 0x0 - dummy sync flag']
  #allocation34 [shape = 's32[]', space=sflag, size = 0x4, offset = 0, fixed_abs, tag = 'sflag constant byte address 0x0 - dummy sync flag']
  #allocation35 [shape = 's32[]', space=sflag, size = 0x4, offset = 0, fixed_abs, tag = 'sflag constant byte address 0x0 - dummy sync flag']
  #allocation36 [shape = 's32[]', space=sflag, size = 0x4, offset = 0, fixed_abs, tag = 'sflag constant byte address 0x0 - dummy sync flag']
  #allocation37 [shape = 's32[]', space=sflag, size = 0x4, offset = 0, fixed_abs, tag = 'sflag constant byte address 0x0 - dummy sync flag']
  #allocation38 [shape = 's32[]', space=sflag, size = 0x4, offset = 0, fixed_abs, tag = 'sflag constant byte address 0x0 - dummy sync flag']
  #allocation39 [shape = 's32[]', space=sflag, size = 0x4, offset = 0, fixed_abs, tag = 'sflag constant byte address 0x0 - dummy sync flag']
  #allocation40 [shape = 's32[]', space=sflag, size = 0x4, offset = 0, fixed_abs, tag = 'sflag constant byte address 0x0 - dummy sync flag']
  #allocation41 [shape = 's32[]', space=sflag, size = 0x4, offset = 0, fixed_abs, tag = 'sflag constant byte address 0x0 - dummy sync flag']
  %s0 = inlined_call_operand.hbm [shape: s32[64], index: 0, kind: input, shape index: {}]
  %s1 = inlined_call_operand.hbm [shape: f32[640,128], index: 1, kind: input, shape index: {}]
  %s2 = inlined_call_operand.hbm [shape: f32[8,128], index: 2, kind: output, shape index: {}]
  %s3 = sld [smem:[#allocation0]]
  $region85: #{tpu_custom_call.1} parent=0
    _
  %s5 = ssub.s32 1, %s3
  %s6 = scalar_select 0, %s5, %s3
  %8 = dma.hbm_to_smem %s0, 16, [#allocation5], [#allocation4]
  %9 = dma.done [#allocation4], 16
  %10 = sfence
  $region1: #{tpu_custom_call.1} parent=0
    #allocation6 [shape = 'u8[4096]{0}', space=vmem, size = 0x1000, scoped, tag = 'output window, operand 0, single buffered']
    #allocation7 [shape = 's32[1]{0}', space=sflag, size = 0x4, scoped, tag = 'scoped memory for tpu_custom_call.1']
    %11 = vsyncpa [#allocation7], 0
    %s12 = smul.u32 0, 64
    %s13 = sld [smem:[#allocation5 + %s12]]
    %s14 = smul.addr %s13, 16
    %s15 = scalar_lea.hbm %s1, %s14
    // Predicated region
    $region2: #{tpu_custom_call.1} parent=1 // pred_check
      _
    $region3: #{tpu_custom_call.1} parent=1 // pred_check_branch
      %17 = sbr.rel target = $region5
    $region4: #{tpu_custom_call.1} parent=1 // pred_region
      %18 = sst [smem:[#allocation10]] [#allocation9]
      %19 = sst [smem:[#allocation11]] [#allocation8]
    $region5: #{tpu_custom_call.1} parent=1 // pred_fallthru
      _
    %21 = shalt.err (0)
    %s23 = sshll.u32 [#allocation2], 4
    %s24 = int_to_ptr.vmem [resolvable:$true] %s23
    %26 = dma.hbm_to_vmem [thread:$0]  %s15, 16, %s24, [#allocation3]
    %s27 = sadd.s32 %s12, 1
    %s28 = sld [smem:[#allocation5 + %s27]]
    %s29 = smul.addr %s28, 16
    %s30 = scalar_lea.hbm %s1, %s29
    %s31 = scalar_lea.vmem [#allocation2], 1
    %s32 = scalar_lea.sflag [#allocation3], 1
    // Predicated region
    $region6: #{tpu_custom_call.1} parent=1 // pred_check
      _
    $region7: #{tpu_custom_call.1} parent=1 // pred_check_branch
      %34 = sbr.rel target = $region9
    $region8: #{tpu_custom_call.1} parent=1 // pred_region
      %35 = sst [smem:[#allocation10]] [#allocation13]
      %36 = sst [smem:[#allocation11]] [#allocation12]
    $region9: #{tpu_custom_call.1} parent=1 // pred_fallthru
      _
    %38 = shalt.err (0)
    %s40 = sshll.u32 %s31, 4
    %s41 = int_to_ptr.vmem [resolvable:$true] %s40
    %43 = dma.hbm_to_vmem [thread:$0]  %s30, 16, %s41, %s32
    %s44 = sadd.s32 %s12, 2
    %s45 = sld [smem:[#allocation5 + %s44]]
    %s46 = smul.addr %s45, 16
    %s47 = scalar_lea.hbm %s1, %s46
    %s48 = scalar_lea.vmem [#allocation2], 2
    %s49 = scalar_lea.sflag [#allocation3], 2
    // Predicated region
    $region10: #{tpu_custom_call.1} parent=1 // pred_check
      _
    $region11: #{tpu_custom_call.1} parent=1 // pred_check_branch
      %51 = sbr.rel target = $region13
    $region12: #{tpu_custom_call.1} parent=1 // pred_region
      %52 = sst [smem:[#allocation10]] [#allocation15]
      %53 = sst [smem:[#allocation11]] [#allocation14]
    $region13: #{tpu_custom_call.1} parent=1 // pred_fallthru
      _
    %55 = shalt.err (0)
    %s57 = sshll.u32 %s48, 4
    %s58 = int_to_ptr.vmem [resolvable:$true] %s57
    %60 = dma.hbm_to_vmem [thread:$0]  %s47, 16, %s58, %s49
    %s61 = sadd.s32 %s12, 3
    %s62 = sld [smem:[#allocation5 + %s61]]
    %s63 = smul.addr %s62, 16
    %s64 = scalar_lea.hbm %s1, %s63
    %s65 = scalar_lea.vmem [#allocation2], 3
    %s66 = scalar_lea.sflag [#allocation3], 3
    // Predicated region
    $region14: #{tpu_custom_call.1} parent=1 // pred_check
      _
    $region15: #{tpu_custom_call.1} parent=1 // pred_check_branch
      %68 = sbr.rel target = $region17
    $region16: #{tpu_custom_call.1} parent=1 // pred_region
      %69 = sst [smem:[#allocation10]] [#allocation17]
      %70 = sst [smem:[#allocation11]] [#allocation16]
    $region17: #{tpu_custom_call.1} parent=1 // pred_fallthru
      _
    %72 = shalt.err (0)
    %s74 = sshll.u32 %s65, 4
    %s75 = int_to_ptr.vmem [resolvable:$true] %s74
    %77 = dma.hbm_to_vmem [thread:$0]  %s64, 16, %s75, %s66
    %s78 = sadd.s32 %s12, 4
    %s79 = sld [smem:[#allocation5 + %s78]]
    %s80 = smul.addr %s79, 16
    %s81 = scalar_lea.hbm %s1, %s80
    %s82 = scalar_lea.vmem [#allocation2], 4
    %s83 = scalar_lea.sflag [#allocation3], 4
    // Predicated region
    $region18: #{tpu_custom_call.1} parent=1 // pred_check
      _
    $region19: #{tpu_custom_call.1} parent=1 // pred_check_branch
      %85 = sbr.rel target = $region21
    $region20: #{tpu_custom_call.1} parent=1 // pred_region
      %86 = sst [smem:[#allocation10]] [#allocation19]
      %87 = sst [smem:[#allocation11]] [#allocation18]
    $region21: #{tpu_custom_call.1} parent=1 // pred_fallthru
      _
    %89 = shalt.err (0)
    %s91 = sshll.u32 %s82, 4
    %s92 = int_to_ptr.vmem [resolvable:$true] %s91
    %94 = dma.hbm_to_vmem [thread:$0]  %s81, 16, %s92, %s83
    %s95 = sadd.s32 %s12, 5
    %s96 = sld [smem:[#allocation5 + %s95]]
    %s97 = smul.addr %s96, 16
    %s98 = scalar_lea.hbm %s1, %s97
    %s99 = scalar_lea.vmem [#allocation2], 5
    %s100 = scalar_lea.sflag [#allocation3], 5
    // Predicated region
    $region22: #{tpu_custom_call.1} parent=1 // pred_check
      _
    $region23: #{tpu_custom_call.1} parent=1 // pred_check_branch
      %102 = sbr.rel target = $region25
    $region24: #{tpu_custom_call.1} parent=1 // pred_region
      %103 = sst [smem:[#allocation10]] [#allocation21]
      %104 = sst [smem:[#allocation11]] [#allocation20]
    $region25: #{tpu_custom_call.1} parent=1 // pred_fallthru
      _
    %106 = shalt.err (0)
    %s108 = sshll.u32 %s99, 4
    %s109 = int_to_ptr.vmem [resolvable:$true] %s108
    %111 = dma.hbm_to_vmem [thread:$0]  %s98, 16, %s109, %s100
    %s112 = sadd.s32 %s12, 6
    %s113 = sld [smem:[#allocation5 + %s112]]
    %s114 = smul.addr %s113, 16
    %s115 = scalar_lea.hbm %s1, %s114
    %s116 = scalar_lea.vmem [#allocation2], 6
    %s117 = scalar_lea.sflag [#allocation3], 6
    // Predicated region
    $region26: #{tpu_custom_call.1} parent=1 // pred_check
      _
    $region27: #{tpu_custom_call.1} parent=1 // pred_check_branch
      %119 = sbr.rel target = $region29
    $region28: #{tpu_custom_call.1} parent=1 // pred_region
      %120 = sst [smem:[#allocation10]] [#allocation23]
      %121 = sst [smem:[#allocation11]] [#allocation22]
    $region29: #{tpu_custom_call.1} parent=1 // pred_fallthru
      _
    %123 = shalt.err (0)
    %s125 = sshll.u32 %s116, 4
    %s126 = int_to_ptr.vmem [resolvable:$true] %s125
    %128 = dma.hbm_to_vmem [thread:$0]  %s115, 16, %s126, %s117
    %s129 = sadd.s32 %s12, 7
    %s130 = sld [smem:[#allocation5 + %s129]]
    %s131 = smul.addr %s130, 16
    %s132 = scalar_lea.hbm %s1, %s131
    %s133 = scalar_lea.vmem [#allocation2], 7
    %s134 = scalar_lea.sflag [#allocation3], 7
    // Predicated region
    $region30: #{tpu_custom_call.1} parent=1 // pred_check
      _
    $region31: #{tpu_custom_call.1} parent=1 // pred_check_branch
      %136 = sbr.rel target = $region33
    $region32: #{tpu_custom_call.1} parent=1 // pred_region
      %137 = sst [smem:[#allocation10]] [#allocation25]
      %138 = sst [smem:[#allocation11]] [#allocation24]
    $region33: #{tpu_custom_call.1} parent=1 // pred_fallthru
      _
    %140 = shalt.err (0)
    %s142 = sshll.u32 %s133, 4
    %s143 = int_to_ptr.vmem [resolvable:$true] %s142
    %145 = dma.hbm_to_vmem [thread:$0]  %s132, 16, %s143, %s134
    loop: start=0, step=1, limit=8
    $region34: #{tpu_custom_call.1} parent=1 // loop_pre_header
      _
    $region35: #{tpu_custom_call.1} parent=1 // loop_header
      %s147 = sphi 0, %s151
      %p148 = scmp.ge.s32.totalorder %s147, 8
    $region36: #{tpu_custom_call.1} parent=1 // loop_header_branch
      %150 = sbr.rel (%p148) target = $region40
    $region37: #{tpu_custom_call.1} parent=1 // loop_body
      %s152 = sand.u32 %s147, 1
      %s153 = smul.u32 %s147, 8
      %s154 = sadd.s32 %s12, %s153
      %s155 = sld [smem:[#allocation5 + %s154]]
      %s156 = sadd.s32 %s154, 1
      %s157 = sld [smem:[#allocation5 + %s156]]
      %s158 = sadd.s32 %s154, 2
      %s159 = sld [smem:[#allocation5 + %s158]]
      %s160 = sadd.s32 %s154, 3
      %s161 = sld [smem:[#allocation5 + %s160]]
      %s162 = sadd.s32 %s154, 4
      %s163 = sld [smem:[#allocation5 + %s162]]
      %s164 = sadd.s32 %s154, 5
      %s165 = sld [smem:[#allocation5 + %s164]]
      %s166 = sadd.s32 %s154, 6
      %s167 = sld [smem:[#allocation5 + %s166]]
      %s168 = sadd.s32 %s154, 7
      %s169 = sld [smem:[#allocation5 + %s168]]
      %p170 = scmp.ne.s32.totalorder %s155, 0
      %s171 = scalar_select %p170, 0.125, 0.0
      %p172 = scmp.ne.s32.totalorder %s157, 0
      %s173 = scalar_select %p172, 0.125, 0.0
      %p174 = scmp.ne.s32.totalorder %s159, 0
      %s175 = scalar_select %p174, 0.125, 0.0
      %p176 = scmp.ne.s32.totalorder %s161, 0
      %s177 = scalar_select %p176, 0.125, 0.0
      %p178 = scmp.ne.s32.totalorder %s163, 0
      %s179 = scalar_select %p178, 0.125, 0.0
      %p180 = scmp.ne.s32.totalorder %s165, 0
      %s181 = scalar_select %p180, 0.125, 0.0
      %p182 = scmp.ne.s32.totalorder %s167, 0
      %s183 = scalar_select %p182, 0.125, 0.0
      %p184 = scmp.ne.s32.totalorder %s169, 0
      %s185 = scalar_select %p184, 0.125, 0.0
      %s186 = sadd.s32 %s147, 1
      %p187 = scmp.lt.s32.totalorder %s186, 8
      // Predicated region
      $region41: #{tpu_custom_call.1} parent=37 // pred_check
        %p188 = pneg %p187
      $region42: #{tpu_custom_call.1} parent=37 // pred_check_branch
        %190 = sbr.rel (%p188) target = $region44
      $region43: #{tpu_custom_call.1} parent=37 // pred_region
        %s191 = ssub.s32 1, %s152
        %s192 = smul.u32 %s186, 8
        %s193 = sadd.s32 %s12, %s192
        %s194 = sld [smem:[#allocation5 + %s193]]
        %s195 = smul.addr %s194, 16
        %s196 = scalar_lea.hbm %s1, %s195
        %s197 = smul.u32 %s191, 8
        %s198 = scalar_lea.vmem [#allocation2], %s197
        %s199 = scalar_lea.sflag [#allocation3], %s197
        // Predicated region
        $region45: #{tpu_custom_call.1} parent=43 // pred_check
          _
        $region46: #{tpu_custom_call.1} parent=43 // pred_check_branch
          %201 = sbr.rel target = $region48
        $region47: #{tpu_custom_call.1} parent=43 // pred_region
          %202 = sst [smem:[#allocation10]] [#allocation27]
          %203 = sst [smem:[#allocation11]] [#allocation26]
        $region48: #{tpu_custom_call.1} parent=43 // pred_fallthru
          _
        %205 = shalt.err (0)
        %s207 = sshll.u32 %s198, 4
        %s208 = int_to_ptr.vmem [resolvable:$true] %s207
        %210 = dma.hbm_to_vmem [thread:$0]  %s196, 16, %s208, %s199
        %s211 = sadd.s32 %s193, 1
        %s212 = sld [smem:[#allocation5 + %s211]]
        %s213 = smul.addr %s212, 16
        %s214 = scalar_lea.hbm %s1, %s213
        %s215 = sadd.s32 1, %s197
        %s216 = scalar_lea.vmem [#allocation2], %s215
        %s217 = scalar_lea.sflag [#allocation3], %s215
        // Predicated region
        $region49: #{tpu_custom_call.1} parent=43 // pred_check
          _
        $region50: #{tpu_custom_call.1} parent=43 // pred_check_branch
          %219 = sbr.rel target = $region52
        $region51: #{tpu_custom_call.1} parent=43 // pred_region
          %220 = sst [smem:[#allocation10]] [#allocation29]
          %221 = sst [smem:[#allocation11]] [#allocation28]
        $region52: #{tpu_custom_call.1} parent=43 // pred_fallthru
          _
        %223 = shalt.err (0)
        %s225 = sshll.u32 %s216, 4
        %s226 = int_to_ptr.vmem [resolvable:$true] %s225
        %228 = dma.hbm_to_vmem [thread:$0]  %s214, 16, %s226, %s217
        %s229 = sadd.s32 %s193, 2
        %s230 = sld [smem:[#allocation5 + %s229]]
        %s231 = smul.addr %s230, 16
        %s232 = scalar_lea.hbm %s1, %s231
        %s233 = sadd.s32 2, %s197
        %s234 = scalar_lea.vmem [#allocation2], %s233
        %s235 = scalar_lea.sflag [#allocation3], %s233
        // Predicated region
        $region53: #{tpu_custom_call.1} parent=43 // pred_check
          _
        $region54: #{tpu_custom_call.1} parent=43 // pred_check_branch
          %237 = sbr.rel target = $region56
        $region55: #{tpu_custom_call.1} parent=43 // pred_region
          %238 = sst [smem:[#allocation10]] [#allocation31]
          %239 = sst [smem:[#allocation11]] [#allocation30]
        $region56: #{tpu_custom_call.1} parent=43 // pred_fallthru
          _
        %241 = shalt.err (0)
        %s243 = sshll.u32 %s234, 4
        %s244 = int_to_ptr.vmem [resolvable:$true] %s243
        %246 = dma.hbm_to_vmem [thread:$0]  %s232, 16, %s244, %s235
        %s247 = sadd.s32 %s193, 3
        %s248 = sld [smem:[#allocation5 + %s247]]
        %s249 = smul.addr %s248, 16
        %s250 = scalar_lea.hbm %s1, %s249
        %s251 = sadd.s32 3, %s197
        %s252 = scalar_lea.vmem [#allocation2], %s251
        %s253 = scalar_lea.sflag [#allocation3], %s251
        // Predicated region
        $region57: #{tpu_custom_call.1} parent=43 // pred_check
          _
        $region58: #{tpu_custom_call.1} parent=43 // pred_check_branch
          %255 = sbr.rel target = $region60
        $region59: #{tpu_custom_call.1} parent=43 // pred_region
          %256 = sst [smem:[#allocation10]] [#allocation33]
          %257 = sst [smem:[#allocation11]] [#allocation32]
        $region60: #{tpu_custom_call.1} parent=43 // pred_fallthru
          _
        %259 = shalt.err (0)
        %s261 = sshll.u32 %s252, 4
        %s262 = int_to_ptr.vmem [resolvable:$true] %s261
        %264 = dma.hbm_to_vmem [thread:$0]  %s250, 16, %s262, %s253
        %s265 = sadd.s32 %s193, 4
        %s266 = sld [smem:[#allocation5 + %s265]]
        %s267 = smul.addr %s266, 16
        %s268 = scalar_lea.hbm %s1, %s267
        %s269 = sadd.s32 4, %s197
        %s270 = scalar_lea.vmem [#allocation2], %s269
        %s271 = scalar_lea.sflag [#allocation3], %s269
        // Predicated region
        $region61: #{tpu_custom_call.1} parent=43 // pred_check
          _
        $region62: #{tpu_custom_call.1} parent=43 // pred_check_branch
          %273 = sbr.rel target = $region64
        $region63: #{tpu_custom_call.1} parent=43 // pred_region
          %274 = sst [smem:[#allocation10]] [#allocation35]
          %275 = sst [smem:[#allocation11]] [#allocation34]
        $region64: #{tpu_custom_call.1} parent=43 // pred_fallthru
          _
        %277 = shalt.err (0)
        %s279 = sshll.u32 %s270, 4
        %s280 = int_to_ptr.vmem [resolvable:$true] %s279
        %282 = dma.hbm_to_vmem [thread:$0]  %s268, 16, %s280, %s271
        %s283 = sadd.s32 %s193, 5
        %s284 = sld [smem:[#allocation5 + %s283]]
        %s285 = smul.addr %s284, 16
        %s286 = scalar_lea.hbm %s1, %s285
        %s287 = sadd.s32 5, %s197
        %s288 = scalar_lea.vmem [#allocation2], %s287
        %s289 = scalar_lea.sflag [#allocation3], %s287
        // Predicated region
        $region65: #{tpu_custom_call.1} parent=43 // pred_check
          _
        $region66: #{tpu_custom_call.1} parent=43 // pred_check_branch
          %291 = sbr.rel target = $region68
        $region67: #{tpu_custom_call.1} parent=43 // pred_region
          %292 = sst [smem:[#allocation10]] [#allocation37]
          %293 = sst [smem:[#allocation11]] [#allocation36]
        $region68: #{tpu_custom_call.1} parent=43 // pred_fallthru
          _
        %295 = shalt.err (0)
        %s297 = sshll.u32 %s288, 4
        %s298 = int_to_ptr.vmem [resolvable:$true] %s297
        %300 = dma.hbm_to_vmem [thread:$0]  %s286, 16, %s298, %s289
        %s301 = sadd.s32 %s193, 6
        %s302 = sld [smem:[#allocation5 + %s301]]
        %s303 = smul.addr %s302, 16
        %s304 = scalar_lea.hbm %s1, %s303
        %s305 = sadd.s32 6, %s197
        %s306 = scalar_lea.vmem [#allocation2], %s305
        %s307 = scalar_lea.sflag [#allocation3], %s305
        // Predicated region
        $region69: #{tpu_custom_call.1} parent=43 // pred_check
          _
        $region70: #{tpu_custom_call.1} parent=43 // pred_check_branch
          %309 = sbr.rel target = $region72
        $region71: #{tpu_custom_call.1} parent=43 // pred_region
          %310 = sst [smem:[#allocation10]] [#allocation39]
          %311 = sst [smem:[#allocation11]] [#allocation38]
        $region72: #{tpu_custom_call.1} parent=43 // pred_fallthru
          _
        %313 = shalt.err (0)
        %s315 = sshll.u32 %s306, 4
        %s316 = int_to_ptr.vmem [resolvable:$true] %s315
        %318 = dma.hbm_to_vmem [thread:$0]  %s304, 16, %s316, %s307
        %s319 = sadd.s32 %s193, 7
        %s320 = sld [smem:[#allocation5 + %s319]]
        %s321 = smul.addr %s320, 16
        %s322 = scalar_lea.hbm %s1, %s321
        %s323 = sadd.s32 7, %s197
        %s324 = scalar_lea.vmem [#allocation2], %s323
        %s325 = scalar_lea.sflag [#allocation3], %s323
        // Predicated region
        $region73: #{tpu_custom_call.1} parent=43 // pred_check
          _
        $region74: #{tpu_custom_call.1} parent=43 // pred_check_branch
          %327 = sbr.rel target = $region76
        $region75: #{tpu_custom_call.1} parent=43 // pred_region
          %328 = sst [smem:[#allocation10]] [#allocation41]
          %329 = sst [smem:[#allocation11]] [#allocation40]
        $region76: #{tpu_custom_call.1} parent=43 // pred_fallthru
          _
        %331 = shalt.err (0)
        %s333 = sshll.u32 %s324, 4
        %s334 = int_to_ptr.vmem [resolvable:$true] %s333
        %336 = dma.hbm_to_vmem [thread:$0]  %s322, 16, %s334, %s325
      $region44: #{tpu_custom_call.1} parent=37 // pred_fallthru
        _
      %s337 = smul.u32 %s152, 8
      %s338 = scalar_lea.sflag [#allocation3], %s337
      %s339 = smul.u32 1, 1
      %s340 = sshll.u32 %s339, 4
      %341 = dma.done %s338, %s340
      %s342 = sadd.s32 1, %s337
      %s343 = scalar_lea.sflag [#allocation3], %s342
      %s344 = sshll.u32 %s339, 4
      %345 = dma.done %s343, %s344
      %s346 = sadd.s32 2, %s337
      %s347 = scalar_lea.sflag [#allocation3], %s346
      %s348 = sshll.u32 %s339, 4
      %349 = dma.done %s347, %s348
      %s350 = sadd.s32 3, %s337
      %s351 = scalar_lea.sflag [#allocation3], %s350
      %s352 = sshll.u32 %s339, 4
      %353 = dma.done %s351, %s352
      %s354 = sadd.s32 4, %s337
      %s355 = scalar_lea.sflag [#allocation3], %s354
      %s356 = sshll.u32 %s339, 4
      %357 = dma.done %s355, %s356
      %s358 = sadd.s32 5, %s337
      %s359 = scalar_lea.sflag [#allocation3], %s358
      %s360 = sshll.u32 %s339, 4
      %361 = dma.done %s359, %s360
      %s362 = sadd.s32 6, %s337
      %s363 = scalar_lea.sflag [#allocation3], %s362
      %s364 = sshll.u32 %s339, 4
      %365 = dma.done %s363, %s364
      %s366 = sadd.s32 7, %s337
      %s367 = scalar_lea.sflag [#allocation3], %s366
      %s368 = sshll.u32 %s339, 4
      %369 = dma.done %s367, %s368
      %s370 = scalar_lea.vmem [#allocation2], %s337
      %v371 = vld [vmem:[%s370] sm:$0xff]
      %v372 = vstv %s171
      %v373 = vmul.f32 %v371, %v372
      %v374 = vstv %s173
      %v375 = vmul.f32 %v371, %v374
      %v377 = vrot.slane %v375, 1
      %v379 = vadd.f32 %v373, %v377
      %v380 = vstv %s175
      %v381 = vmul.f32 %v371, %v380
      %v383 = vrot.slane %v381, 2
      %v385 = vadd.f32 %v379, %v383
      %v386 = vstv %s177
      %v387 = vmul.f32 %v371, %v386
      %v389 = vrot.slane %v387, 3
      %v391 = vadd.f32 %v385, %v389
      %v392 = vstv %s179
      %v393 = vmul.f32 %v371, %v392
      %v395 = vrot.slane %v393, 4
      %v397 = vadd.f32 %v391, %v395
      %v398 = vstv %s181
      %v399 = vmul.f32 %v371, %v398
      %v401 = vrot.slane %v399, 5
      %v403 = vadd.f32 %v397, %v401
      %v404 = vstv %s183
      %v405 = vmul.f32 %v371, %v404
      %v407 = vrot.slane %v405, 6
      %v409 = vadd.f32 %v403, %v407
      %v410 = vstv %s185
      %v411 = vmul.f32 %v371, %v410
      %v413 = vrot.slane %v411, 7
      %v415 = vadd.f32 %v409, %v413
      %s416 = scalar_lea.vmem [#allocation6], %s147
      %417 = vst [vmem:[%s416] sm:$0x1] %v415
    $region38: #{tpu_custom_call.1} parent=1 // loop_footer
      %s151 = sadd.s32 1, %s147
    $region39: #{tpu_custom_call.1} parent=1 // loop_footer_branch
      %146 = sbr.rel target = $region35
    $region40: #{tpu_custom_call.1} parent=1 // loop_exit
      _
    // Predicated region
    $region77: #{tpu_custom_call.1} parent=1 // pred_check
      _
    $region78: #{tpu_custom_call.1} parent=1 // pred_check_branch
      %419 = sbr.rel (0) target = $region80
    $region79: #{tpu_custom_call.1} parent=1 // pred_region
      %s421 = ssub.s32 128, 128
      %422 = vsyncadd [#allocation7], %s421
      %s424 = sshll.u32 [#allocation6], 4
      %s425 = int_to_ptr.vmem [resolvable:$true] %s424
      %427 = dma.vmem_to_hbm [thread:$0]  %s425, 128, %s2, [#allocation7]
    $region80: #{tpu_custom_call.1} parent=1 // pred_fallthru
      _
    // Predicated region
    $region81: #{tpu_custom_call.1} parent=1 // pred_check
      _
    $region82: #{tpu_custom_call.1} parent=1 // pred_check_branch
      %429 = sbr.rel (0) target = $region84
    $region83: #{tpu_custom_call.1} parent=1 // pred_region
      %430 = dma.done [#allocation7], 128
    $region84: #{tpu_custom_call.1} parent=1 // pred_fallthru
      _
    %431 = vsyncpa [#allocation7], 1
  %432 = vsyncmov [#allocation3]
  %s433 = vpop.sfrf %432
  %p434 = scmp.eq.s32.totalorder %s433, 0
  %p435 = pneg %p434
  %437 = shalt.err (%p435)
  %s438 = scalar_lea.sflag [#allocation3], 1
  %439 = vsyncmov %s438
  %s440 = vpop.sfrf %439
  %p441 = scmp.eq.s32.totalorder %s440, 0
  %p442 = pneg %p441
  %444 = shalt.err (%p442)
  %s445 = scalar_lea.sflag [#allocation3], 2
  %446 = vsyncmov %s445
  %s447 = vpop.sfrf %446
  %p448 = scmp.eq.s32.totalorder %s447, 0
  %p449 = pneg %p448
  %451 = shalt.err (%p449)
  %s452 = scalar_lea.sflag [#allocation3], 3
  %453 = vsyncmov %s452
  %s454 = vpop.sfrf %453
  %p455 = scmp.eq.s32.totalorder %s454, 0
  %p456 = pneg %p455
  %458 = shalt.err (%p456)
  %s459 = scalar_lea.sflag [#allocation3], 4
  %460 = vsyncmov %s459
  %s461 = vpop.sfrf %460
  %p462 = scmp.eq.s32.totalorder %s461, 0
  %p463 = pneg %p462
  %465 = shalt.err (%p463)
  %s466 = scalar_lea.sflag [#allocation3], 5
  %467 = vsyncmov %s466
  %s468 = vpop.sfrf %467
  %p469 = scmp.eq.s32.totalorder %s468, 0
  %p470 = pneg %p469
  %472 = shalt.err (%p470)
  %s473 = scalar_lea.sflag [#allocation3], 6
  %474 = vsyncmov %s473
  %s475 = vpop.sfrf %474
  %p476 = scmp.eq.s32.totalorder %s475, 0
  %p477 = pneg %p476
  %479 = shalt.err (%p477)
  %s480 = scalar_lea.sflag [#allocation3], 7
  %481 = vsyncmov %s480
  %s482 = vpop.sfrf %481
  %p483 = scmp.eq.s32.totalorder %s482, 0
  %p484 = pneg %p483
  %486 = shalt.err (%p484)
  %s487 = scalar_lea.sflag [#allocation3], 8
  %488 = vsyncmov %s487
  %s489 = vpop.sfrf %488
  %p490 = scmp.eq.s32.totalorder %s489, 0
  %p491 = pneg %p490
  %493 = shalt.err (%p491)
  %s494 = scalar_lea.sflag [#allocation3], 9
  %495 = vsyncmov %s494
  %s496 = vpop.sfrf %495
  %p497 = scmp.eq.s32.totalorder %s496, 0
  %p498 = pneg %p497
  %500 = shalt.err (%p498)
  %s501 = scalar_lea.sflag [#allocation3], 10
  %502 = vsyncmov %s501
  %s503 = vpop.sfrf %502
  %p504 = scmp.eq.s32.totalorder %s503, 0
  %p505 = pneg %p504
  %507 = shalt.err (%p505)
  %s508 = scalar_lea.sflag [#allocation3], 11
  %509 = vsyncmov %s508
  %s510 = vpop.sfrf %509
  %p511 = scmp.eq.s32.totalorder %s510, 0
  %p512 = pneg %p511
  %514 = shalt.err (%p512)
  %s515 = scalar_lea.sflag [#allocation3], 12
  %516 = vsyncmov %s515
  %s517 = vpop.sfrf %516
  %p518 = scmp.eq.s32.totalorder %s517, 0
  %p519 = pneg %p518
  %521 = shalt.err (%p519)
  %s522 = scalar_lea.sflag [#allocation3], 13
  %523 = vsyncmov %s522
  %s524 = vpop.sfrf %523
  %p525 = scmp.eq.s32.totalorder %s524, 0
  %p526 = pneg %p525
  %528 = shalt.err (%p526)
  %s529 = scalar_lea.sflag [#allocation3], 14
  %530 = vsyncmov %s529
  %s531 = vpop.sfrf %530
  %p532 = scmp.eq.s32.totalorder %s531, 0
  %p533 = pneg %p532
  %535 = shalt.err (%p533)
  %s536 = scalar_lea.sflag [#allocation3], 15
  %537 = vsyncmov %s536
  %s538 = vpop.sfrf %537
  %p539 = scmp.eq.s32.totalorder %s538, 0
  %p540 = pneg %p539
  %542 = shalt.err (%p540)

</llo_original>
